<compile_context>
chip_gen: v6e
topology: v6e:2x2x1
jax: 0.10.0
libtpu: 0.0.40
codegen_flags: <defaults>
</compile_context>

<pallas_src>
import math
from functools import partial

import jax
import jax.numpy as jnp
from jax.experimental import pallas as pl
from jax.experimental.pallas import tpu as pltpu

STATE_DIM = 3       # Pendulum-v1 observation dim
ACTION_DIM = 1
ACTION_RANGE = 2.0
HIDDEN = 32
LANE = 128

_SELU_ALPHA = 1.6732632423543772
_SELU_SCALE = 1.0507009873554805
_HIGHEST = jax.lax.Precision.HIGHEST


def _selu_unscaled(x):
    # SELU without the 1.0507 scale (the scale is folded into the downstream weights).
    # exp only on the clamped-negative branch so the unselected branch can't overflow.
    neg = _SELU_ALPHA * (jnp.exp(jnp.minimum(x, 0.0)) - 1.0)
    return jnp.where(x > 0, x, neg).astype(x.dtype)


def actor_kernel(x_ref, w1_ref, b1_ref, w2_ref, b2_ref, w3_ref, b3_ref, o_ref,
                 *, compute_dtype=jnp.float32):
    xT = x_ref[...]                                       # (STATE_DIM, TB), batch on lanes

    # ---- layer 1: (32,3) @ (3,TB) on the MXU (vector-extended slot has huge slack). ----
    h = jnp.dot(w1_ref[...], xT, preferred_element_type=jnp.float32,
                precision=_HIGHEST) + b1_ref[...]
    h = _selu_unscaled(h.astype(compute_dtype))           # (HIDDEN, TB)

    # ---- layer 2: (32,32) @ (32,TB); SELU scale pre-folded into w2. ----
    h = jnp.dot(w2_ref[...], h, preferred_element_type=jnp.float32,
                precision=_HIGHEST) + b2_ref[...]
    h = _selu_unscaled(h.astype(compute_dtype))           # (HIDDEN, TB)

    # ---- layer 3: (1,32) @ (32,TB) on the MXU; SELU scale pre-folded into w3. ----
    a = jnp.dot(w3_ref[...], h.astype(jnp.float32), preferred_element_type=jnp.float32,
                precision=_HIGHEST) + b3_ref[...]         # (1, TB)
    o_ref[...] = (jnp.tanh(a) * ACTION_RANGE).astype(o_ref.dtype)


def _choose_tile(batch, batch_tile):
    """Pick a lane-aligned batch tile; prefer >=2 grid tiles (v7x has 2 TensorCores)."""
    b_lanes = pl.cdiv(batch, LANE) * LANE
    if b_lanes >= 2 * LANE:
        max_tb = max(LANE, ((b_lanes // 2) // LANE) * LANE)
    else:
        max_tb = LANE
    tb = max(LANE, (min(batch_tile, max_tb) // LANE) * LANE)
    b_pad = pl.cdiv(batch, tb) * tb
    return tb, b_pad


@partial(jax.jit, static_argnames=("batch_tile", "bf16_activations"))
def actor_forward(x, kparams, *, batch_tile=8192, bf16_activations=False):
    """x: (B, STATE_DIM) float32 -> (B, ACTION_DIM) float32.

    kparams must come from prepare_kernel_params (transposed layout, SELU scale folded).
    bf16_activations: optional v6e/v7x elementwise speedup (breaks exact f32 parity).
    """
    B = x.shape[0]
    w1, b1, w2, b2, w3, b3 = (kparams["w1"], kparams["b1"], kparams["w2"],
                              kparams["b2"], kparams["w3"], kparams["b3"])

    tb, b_pad = _choose_tile(B, batch_tile)
    grid = (b_pad // tb,)

    # Layout plumbing (pad batch, put it on the lane axis) fuses under this jit.
    xT = jnp.pad(x.astype(jnp.float32), ((0, b_pad - B), (0, 0))).T   # (STATE_DIM, b_pad)

    const = lambda arr: pl.BlockSpec(arr.shape, lambda i: (0, 0))     # VMEM-resident

    compute_dtype = jnp.bfloat16 if bf16_activations else jnp.float32

    outT = pl.pallas_call(
        partial(actor_kernel, compute_dtype=compute_dtype),
        out_shape=jax.ShapeDtypeStruct((ACTION_DIM, b_pad), jnp.float32),
        grid=grid,
        in_specs=[pl.BlockSpec((STATE_DIM, tb), lambda i: (0, i)),
                  const(w1), const(b1), const(w2), const(b2),
                  const(w3), const(b3)],
        out_specs=pl.BlockSpec((ACTION_DIM, tb), lambda i: (0, i)),
        compiler_params=pltpu.CompilerParams(
            dimension_semantics=("parallel",)),   # batch tiles shard across TCs on v7x
    )(xT, w1, b1, w2, b2, w3, b3)

    # (1, B) -> (B, 1): trivial reshape-transpose (dim of size 1), fused under jit.
    return outT[:, :B].T


def prepare_kernel_params(params):
    """One-time transform of PyTorch-style params into the kernel layout.

    - weights kept as nn.Linear's (out, in), which is already the (M, K) the
      transposed-activation kernel needs,
    - SELU's 1.0507 scale folded into w2 / w3 (numerically equivalent rescale),
    - biases reshaped to column vectors (broadcast across lanes in-kernel).
    """
    return {
        "w1": params["w1"].astype(jnp.float32),                         # (32, 3)
        "b1": params["b1"].astype(jnp.float32).reshape(HIDDEN, 1),
        "w2": (params["w2"] * _SELU_SCALE).astype(jnp.float32),         # (32, 32)
        "b2": params["b2"].astype(jnp.float32).reshape(HIDDEN, 1),
        "w3": (params["w3"] * _SELU_SCALE).astype(jnp.float32),         # (1, 32)
        "b3": params["b3"].astype(jnp.float32).reshape(ACTION_DIM, 1),
    }


def actor_reference(x, params):
    """Pure-jnp reference matching the PyTorch module (standard SELU, f32)."""
    def selu(v):
        return _SELU_SCALE * jnp.where(v > 0, v, _SELU_ALPHA * (jnp.exp(jnp.minimum(v, 0.0)) - 1.0))
    h = selu(x @ params["w1"].T + params["b1"])
    h = selu(h @ params["w2"].T + params["b2"])
    return jnp.tanh(h @ params["w3"].T + params["b3"]) * ACTION_RANGE


def init_params(key):
    """Deterministic init mimicking kaiming_normal_(fan_in) of the PyTorch module.
    Shapes match nn.Linear: weight (out, in), bias (out,).
    """
    k1, k2, k3, k4, k5, k6 = jax.random.split(key, 6)

    def kaiming(key, shape, fan_in, gain):
        std = gain / math.sqrt(fan_in)
        return (std * jax.random.normal(key, shape)).astype(jnp.float32)

    def bias(key, fan_in, fan_out):
        bound = 1.0 / math.sqrt(fan_in)
        return jax.random.uniform(key, (fan_out,), minval=-bound, maxval=bound).astype(jnp.float32)

    gain_selu = 0.75     # torch.nn.init.calculate_gain('selu') == 3/4
    gain_linear = 1.0
    return {
        "w1": kaiming(k1, (HIDDEN, STATE_DIM), STATE_DIM, gain_selu),
        "b1": bias(k2, STATE_DIM, HIDDEN),
        "w2": kaiming(k3, (HIDDEN, HIDDEN), HIDDEN, gain_selu),
        "b2": bias(k4, HIDDEN, HIDDEN),
        "w3": kaiming(k5, (ACTION_DIM, HIDDEN), HIDDEN, gain_linear),
        "b3": bias(k6, HIDDEN, ACTION_DIM),
    }


if __name__ == "__main__":
    key = jax.random.PRNGKey(0)
    pkey, xkey1, xkey2 = jax.random.split(key, 3)

    params = init_params(pkey)
    kparams = prepare_kernel_params(params)

    # Small batch (single tile).
    batch = 8
    state = jax.random.normal(xkey1, (batch, STATE_DIM), dtype=jnp.float32)
    out = actor_forward(state, kparams)
    jax.block_until_ready(out)
    ref = actor_reference(state, params)
    assert out.shape == (batch, ACTION_DIM)
    assert bool(jnp.all(jnp.abs(out) <= ACTION_RANGE + 1e-5))
    assert bool(jnp.allclose(out, ref, rtol=1e-5, atol=1e-5)), (
        f"max abs err {float(jnp.max(jnp.abs(out - ref)))}")

    # Larger batch exercising the multi-tile (megacore-shardable) grid path.
    batch2 = 300
    state2 = jax.random.normal(xkey2, (batch2, STATE_DIM), dtype=jnp.float32)
    out2 = actor_forward(state2, kparams)
    jax.block_until_ready(out2)
    ref2 = actor_reference(state2, params)
    assert out2.shape == (batch2, ACTION_DIM)
    assert bool(jnp.allclose(out2, ref2, rtol=1e-5, atol=1e-5)), (
        f"max abs err {float(jnp.max(jnp.abs(out2 - ref2)))}")

    print("KERNEL_OK")
</pallas_src>

<mosaic_0001>
module attributes {stable_mosaic.version = 11 : i64} {
  func.func @actor_kernel(%arg0: i32, %arg1: memref<3x128xf32, #tpu.memory_space<vmem>>, %arg2: memref<32x3xf32, #tpu.memory_space<vmem>>, %arg3: memref<32x1xf32, #tpu.memory_space<vmem>>, %arg4: memref<32x32xf32, #tpu.memory_space<vmem>>, %arg5: memref<32x1xf32, #tpu.memory_space<vmem>>, %arg6: memref<1x32xf32, #tpu.memory_space<vmem>>, %arg7: memref<1x1xf32, #tpu.memory_space<vmem>>, %arg8: memref<1x128xf32, #tpu.memory_space<vmem>>) attributes {dimension_semantics = [#tpu.dimension_semantics<parallel>], iteration_bounds = array<i64: 1>, scalar_prefetch = 0 : i64, scratch_operands = 0 : i64, tpu.core_type = #tpu.core_type<tc>, window_params = [{transform_indices = @transform_0, window_bounds = array<i64: 3, 128>}, {pipeline_mode = #tpu.pipeline_mode<synchronous>, transform_indices = @transform_1, window_bounds = array<i64: 32, 3>}, {pipeline_mode = #tpu.pipeline_mode<synchronous>, transform_indices = @transform_2, window_bounds = array<i64: 32, 1>}, {pipeline_mode = #tpu.pipeline_mode<synchronous>, transform_indices = @transform_3, window_bounds = array<i64: 32, 32>}, {pipeline_mode = #tpu.pipeline_mode<synchronous>, transform_indices = @transform_4, window_bounds = array<i64: 32, 1>}, {pipeline_mode = #tpu.pipeline_mode<synchronous>, transform_indices = @transform_5, window_bounds = array<i64: 1, 32>}, {pipeline_mode = #tpu.pipeline_mode<synchronous>, transform_indices = @transform_6, window_bounds = array<i64: 1, 1>}, {transform_indices = @transform_7, window_bounds = array<i64: 1, 128>}]} {
    %c0 = arith.constant 0 : index
    %c0_0 = arith.constant 0 : index
    %0 = vector.load %arg1[%c0, %c0_0] : memref<3x128xf32, #tpu.memory_space<vmem>>, vector<3x128xf32>
    %c0_1 = arith.constant 0 : index
    %c0_2 = arith.constant 0 : index
    %1 = vector.load %arg2[%c0_1, %c0_2] : memref<32x3xf32, #tpu.memory_space<vmem>>, vector<32x3xf32>
    %cst = arith.constant dense<0.000000e+00> : vector<32x128xf32>
    %2 = tpu.matmul %1, %0, %cst {dimension_numbers = #tpu.dot_dimension_numbers<[1], [0], [0], [1], [0, 0, 1, 1], [], []>, precision = #tpu.contract_precision<fp32>} : vector<32x3xf32>, vector<3x128xf32>, vector<32x128xf32> -> vector<32x128xf32>
    %c0_3 = arith.constant 0 : index
    %c0_4 = arith.constant 0 : index
    %3 = vector.load %arg3[%c0_3, %c0_4] : memref<32x1xf32, #tpu.memory_space<vmem>>, vector<32x1xf32>
    %4 = vector.broadcast %3 : vector<32x1xf32> to vector<32x128xf32>
    %5 = arith.addf %2, %4 : vector<32x128xf32>
    %cst_5 = arith.constant 0.000000e+00 : f32
    %6 = vector.broadcast %cst_5 : f32 to vector<32x128xf32>
    %7 = arith.minimumf %5, %6 : vector<32x128xf32>
    %8 = math.exp %7 : vector<32x128xf32>
    %cst_6 = arith.constant 1.000000e+00 : f32
    %9 = vector.broadcast %cst_6 : f32 to vector<32x128xf32>
    %10 = arith.subf %8, %9 : vector<32x128xf32>
    %cst_7 = arith.constant 1.67326319 : f32
    %11 = vector.broadcast %cst_7 : f32 to vector<32x128xf32>
    %12 = arith.mulf %11, %10 : vector<32x128xf32>
    %cst_8 = arith.constant 0.000000e+00 : f32
    %13 = vector.broadcast %cst_8 : f32 to vector<32x128xf32>
    %14 = arith.cmpf ogt, %5, %13 : vector<32x128xf32>
    %15 = arith.select %14, %5, %12 : vector<32x128xi1>, vector<32x128xf32>
    %c0_9 = arith.constant 0 : index
    %c0_10 = arith.constant 0 : index
    %16 = vector.load %arg4[%c0_9, %c0_10] : memref<32x32xf32, #tpu.memory_space<vmem>>, vector<32x32xf32>
    %cst_11 = arith.constant dense<0.000000e+00> : vector<32x128xf32>
    %17 = tpu.matmul %16, %15, %cst_11 {dimension_numbers = #tpu.dot_dimension_numbers<[1], [0], [0], [1], [0, 0, 1, 1], [], []>, precision = #tpu.contract_precision<fp32>} : vector<32x32xf32>, vector<32x128xf32>, vector<32x128xf32> -> vector<32x128xf32>
    %c0_12 = arith.constant 0 : index
    %c0_13 = arith.constant 0 : index
    %18 = vector.load %arg5[%c0_12, %c0_13] : memref<32x1xf32, #tpu.memory_space<vmem>>, vector<32x1xf32>
    %19 = vector.broadcast %18 : vector<32x1xf32> to vector<32x128xf32>
    %20 = arith.addf %17, %19 : vector<32x128xf32>
    %cst_14 = arith.constant 0.000000e+00 : f32
    %21 = vector.broadcast %cst_14 : f32 to vector<32x128xf32>
    %22 = arith.minimumf %20, %21 : vector<32x128xf32>
    %23 = math.exp %22 : vector<32x128xf32>
    %cst_15 = arith.constant 1.000000e+00 : f32
    %24 = vector.broadcast %cst_15 : f32 to vector<32x128xf32>
    %25 = arith.subf %23, %24 : vector<32x128xf32>
    %cst_16 = arith.constant 1.67326319 : f32
    %26 = vector.broadcast %cst_16 : f32 to vector<32x128xf32>
    %27 = arith.mulf %26, %25 : vector<32x128xf32>
    %cst_17 = arith.constant 0.000000e+00 : f32
    %28 = vector.broadcast %cst_17 : f32 to vector<32x128xf32>
    %29 = arith.cmpf ogt, %20, %28 : vector<32x128xf32>
    %30 = arith.select %29, %20, %27 : vector<32x128xi1>, vector<32x128xf32>
    %c0_18 = arith.constant 0 : index
    %c0_19 = arith.constant 0 : index
    %31 = vector.load %arg6[%c0_18, %c0_19] : memref<1x32xf32, #tpu.memory_space<vmem>>, vector<1x32xf32>
    %cst_20 = arith.constant dense<0.000000e+00> : vector<1x128xf32>
    %32 = tpu.matmul %31, %30, %cst_20 {dimension_numbers = #tpu.dot_dimension_numbers<[1], [0], [0], [1], [0, 0, 1, 1], [], []>, precision = #tpu.contract_precision<fp32>} : vector<1x32xf32>, vector<32x128xf32>, vector<1x128xf32> -> vector<1x128xf32>
    %c0_21 = arith.constant 0 : index
    %c0_22 = arith.constant 0 : index
    %33 = vector.load %arg7[%c0_21, %c0_22] : memref<1x1xf32, #tpu.memory_space<vmem>>, vector<1x1xf32>
    %34 = vector.broadcast %33 : vector<1x1xf32> to vector<1x128xf32>
    %35 = arith.addf %32, %34 : vector<1x128xf32>
    %36 = math.tanh %35 : vector<1x128xf32>
    %cst_23 = arith.constant 2.000000e+00 : f32
    %37 = vector.broadcast %cst_23 : f32 to vector<1x128xf32>
    %38 = arith.mulf %36, %37 : vector<1x128xf32>
    %c0_24 = arith.constant 0 : index
    %c0_25 = arith.constant 0 : index
    %39 = vector.load %arg8[%c0_24, %c0_25] : memref<1x128xf32, #tpu.memory_space<vmem>>, vector<1x128xf32>
    tpu.vector_store %arg8[%c0_24, %c0_25], %38 {strides = array<i32>} : memref<1x128xf32, #tpu.memory_space<vmem>>, vector<1x128xf32>,
    return
  }
  func.func @transform_0(%arg0: i32) -> (i32, i32) {
    %c0_i32 = arith.constant 0 : i32
    %c0_i32_0 = arith.constant 0 : i32
    return %c0_i32, %arg0 : i32, i32
  }
  func.func @transform_1(%arg0: i32) -> (i32, i32) {
    %c0_i32 = arith.constant 0 : i32
    %c0_i32_0 = arith.constant 0 : i32
    %c0_i32_1 = arith.constant 0 : i32
    return %c0_i32, %c0_i32_0 : i32, i32
  }
  func.func @transform_2(%arg0: i32) -> (i32, i32) {
    %c0_i32 = arith.constant 0 : i32
    %c0_i32_0 = arith.constant 0 : i32
    %c0_i32_1 = arith.constant 0 : i32
    return %c0_i32, %c0_i32_0 : i32, i32
  }
  func.func @transform_3(%arg0: i32) -> (i32, i32) {
    %c0_i32 = arith.constant 0 : i32
    %c0_i32_0 = arith.constant 0 : i32
    %c0_i32_1 = arith.constant 0 : i32
    return %c0_i32, %c0_i32_0 : i32, i32
  }
  func.func @transform_4(%arg0: i32) -> (i32, i32) {
    %c0_i32 = arith.constant 0 : i32
    %c0_i32_0 = arith.constant 0 : i32
    %c0_i32_1 = arith.constant 0 : i32
    return %c0_i32, %c0_i32_0 : i32, i32
  }
  func.func @transform_5(%arg0: i32) -> (i32, i32) {
    %c0_i32 = arith.constant 0 : i32
    %c0_i32_0 = arith.constant 0 : i32
    %c0_i32_1 = arith.constant 0 : i32
    return %c0_i32, %c0_i32_0 : i32, i32
  }
  func.func @transform_6(%arg0: i32) -> (i32, i32) {
    %c0_i32 = arith.constant 0 : i32
    %c0_i32_0 = arith.constant 0 : i32
    %c0_i32_1 = arith.constant 0 : i32
    return %c0_i32, %c0_i32_0 : i32, i32
  }
  func.func @transform_7(%arg0: i32) -> (i32, i32) {
    %c0_i32 = arith.constant 0 : i32
    %c0_i32_0 = arith.constant 0 : i32
    return %c0_i32, %arg0 : i32, i32
  }
}

</mosaic_0001>

<llo_original>
// kernel: actor_forward.1
$region0: #{actor_forward.1}
  #allocation0 [shape = 'u32[]', space=smem, size = 0x4, offset = 0x4, fixed_abs, tag = 'smem constant byte address 0x4 - core index']
  #allocation1 [shape = 'u32[144,128]{1,0:T(1,128)}', space=vmem, size = 0x12000, scoped, tag = 'internal scratch']
  #allocation2 [shape = 'f32[1,1]{1,0:T(1,128)S(1)}', space=vmem, size = 0x200, scoped, tag = 'scoped memory for actor_forward.1']
  %s0 = inlined_call_operand.vmem [shape: f32[3,128], index: 0, kind: input, shape index: {}]
  %s1 = inlined_call_operand.vmem [shape: f32[32,3], index: 1, kind: input, shape index: {}]
  %s2 = inlined_call_operand.vmem [shape: f32[32,1], index: 2, kind: input, shape index: {}]
  %s3 = inlined_call_operand.vmem [shape: f32[32,32], index: 3, kind: input, shape index: {}]
  %s4 = inlined_call_operand.vmem [shape: f32[32,1], index: 4, kind: input, shape index: {}]
  %s5 = inlined_call_operand.vmem [shape: f32[1,32], index: 5, kind: input, shape index: {}]
  %s6 = inlined_call_operand.<no memory space> [shape: f32[1,1], index: 6, kind: input, shape index: {}]
  %s7 = inlined_call_operand.vmem [shape: f32[1,128], index: 7, kind: output, shape index: {}]
  %s8 = sld [smem:[#allocation0]]
  $region38: #{actor_forward.1} parent=0
    _
  %s10 = ssub.s32 1, %s8
  %s11 = scalar_select 0, %s10, %s8
  %v12 = vstv %s6
  %13 = vst [vmem:[#allocation2] sm:$0x1] %v12
  // Predicated region
  $region2: #{actor_forward.1} parent=0 // pred_check
    _
  $region3: #{actor_forward.1} parent=0 // pred_check_branch
    %15 = sbr.rel (0) target = $region5
  $region4: #{actor_forward.1} parent=0 // pred_region
    _
  $region5: #{actor_forward.1} parent=0 // pred_fallthru
    _
  // Predicated region
  $region6: #{actor_forward.1} parent=0 // pred_check
    _
  $region7: #{actor_forward.1} parent=0 // pred_check_branch
    %17 = sbr.rel (0) target = $region9
  $region8: #{actor_forward.1} parent=0 // pred_region
    _
  $region9: #{actor_forward.1} parent=0 // pred_fallthru
    _
  // Predicated region
  $region10: #{actor_forward.1} parent=0 // pred_check
    _
  $region11: #{actor_forward.1} parent=0 // pred_check_branch
    %19 = sbr.rel (0) target = $region13
  $region12: #{actor_forward.1} parent=0 // pred_region
    _
  $region13: #{actor_forward.1} parent=0 // pred_fallthru
    _
  // Predicated region
  $region14: #{actor_forward.1} parent=0 // pred_check
    _
  $region15: #{actor_forward.1} parent=0 // pred_check_branch
    %21 = sbr.rel (0) target = $region17
  $region16: #{actor_forward.1} parent=0 // pred_region
    _
  $region17: #{actor_forward.1} parent=0 // pred_fallthru
    _
  // Predicated region
  $region18: #{actor_forward.1} parent=0 // pred_check
    _
  $region19: #{actor_forward.1} parent=0 // pred_check_branch
    %23 = sbr.rel (0) target = $region21
  $region20: #{actor_forward.1} parent=0 // pred_region
    _
  $region21: #{actor_forward.1} parent=0 // pred_fallthru
    _
  // Predicated region
  $region22: #{actor_forward.1} parent=0 // pred_check
    _
  $region23: #{actor_forward.1} parent=0 // pred_check_branch
    %25 = sbr.rel (0) target = $region25
  $region24: #{actor_forward.1} parent=0 // pred_region
    _
  $region25: #{actor_forward.1} parent=0 // pred_fallthru
    _
  // Predicated region
  $region26: #{actor_forward.1} parent=0 // pred_check
    _
  $region27: #{actor_forward.1} parent=0 // pred_check_branch
    %27 = sbr.rel (0) target = $region29
  $region28: #{actor_forward.1} parent=0 // pred_region
    _
  $region29: #{actor_forward.1} parent=0 // pred_fallthru
    _
  %v28 = vld [vmem:[%s0] sm:$0x7]
  %v29 = vld [vmem:[%s1] sm:$0xff]
  %v30 = vld [vmem:[%s1 + $0x8] sm:$0xff]
  %v31 = vld [vmem:[%s1 + $0x10] sm:$0xff]
  %v32 = vld [vmem:[%s1 + $0x18] sm:$0xff]
  %v33 = vld [vmem:[%s2] sm:$0xff]
  %v34 = vld [vmem:[%s2 + $0x8] sm:$0xff]
  %v35 = vld [vmem:[%s2 + $0x10] sm:$0xff]
  %v36 = vld [vmem:[%s2 + $0x18] sm:$0xff]
  %38 = vset.pattern.permute.xlu0 0
  %39 = vperm.xlu0 %38, %v33
  %v40 = vpop.permute.xlu0 %39
  %43 = vset.pattern.permute.xlu0 0
  %44 = vperm.xlu0 %43, %v34
  %v45 = vpop.permute.xlu0 %44
  %48 = vset.pattern.permute.xlu0 0
  %49 = vperm.xlu0 %48, %v35
  %v50 = vpop.permute.xlu0 %49
  %53 = vset.pattern.permute.xlu0 0
  %54 = vperm.xlu0 %53, %v36
  %v55 = vpop.permute.xlu0 %54
  %vm57 = vcmask 23552
  %v59 = vsel %vm57, %v29, 0
  %v62 = vsel %vm57, %v30, 0
  %v65 = vsel %vm57, %v31, 0
  %v68 = vsel %vm57, %v32, 0
  %vm70 = vcmask 1042432
  %v72 = vsel %vm70, %v28, 0
  %74 = vmatprep.subr.mxu0 0.0
  %75 = vmatpush1.msra.mxu0 0.0
  %76 = vmatprep.subr.mxu0 0.0
  %77 = vmatpush1.msra.mxu0 0.0
  %78 = vmatprep.subr.mxu0 0.0
  %79 = vmatpush1.msra.mxu0 0.0
  %80 = vmatprep.subr.mxu0 0.0
  %81 = vmatpush1.msra.mxu0 0.0
  %82 = vmatprep.subr.mxu0 0.0
  %83 = vmatpush1.msra.mxu0 0.0
  %84 = vmatprep.subr.mxu0 0.0
  %85 = vmatpush1.msra.mxu0 0.0
  %86 = vmatprep.subr.mxu0 0.0
  %87 = vmatpush1.msra.mxu0 0.0
  %88 = vmatprep.subr.mxu0 0.0
  %89 = vmatpush1.msra.mxu0 0.0
  %90 = vmatprep.subr.mxu0 0.0
  %91 = vmatpush1.msra.mxu0 0.0
  %92 = vmatprep.subr.mxu0 0.0
  %93 = vmatpush1.msra.mxu0 0.0
  %94 = vmatprep.subr.mxu0 0.0
  %95 = vmatpush1.msra.mxu0 0.0
  %96 = vmatprep.subr.mxu0 0.0
  %97 = vmatpush1.msra.mxu0 0.0
  %98 = vmatprep.subr.mxu0 0.0
  %99 = vmatpush1.msra.mxu0 0.0
  %100 = vmatprep.subr.mxu0 0.0
  %101 = vmatpush1.msra.mxu0 0.0
  %102 = vmatprep.subr.mxu0 0.0
  %103 = vmatpush1.msra.mxu0 0.0
  %104 = vmatprep.subr.mxu0 0.0
  %v105 = vand.u32 %v72, 4294901760
  %106 = vmatpush1.msra.mxu0 %v105
  %107 = vmatprep.subr.mxu0 0.0
  %108 = vmatpush2.msra.mxu0 0.0
  %109 = vmatprep.subr.mxu0 0.0
  %110 = vmatpush2.msra.mxu0 0.0
  %111 = vmatprep.subr.mxu0 0.0
  %112 = vmatpush2.msra.mxu0 0.0
  %113 = vmatprep.subr.mxu0 0.0
  %114 = vmatpush2.msra.mxu0 0.0
  %115 = vmatprep.subr.mxu0 0.0
  %116 = vmatpush2.msra.mxu0 0.0
  %117 = vmatprep.subr.mxu0 0.0
  %118 = vmatpush2.msra.mxu0 0.0
  %119 = vmatprep.subr.mxu0 0.0
  %120 = vmatpush2.msra.mxu0 0.0
  %121 = vmatprep.subr.mxu0 0.0
  %122 = vmatpush2.msra.mxu0 0.0
  %123 = vmatprep.subr.mxu0 0.0
  %124 = vmatpush2.msra.mxu0 0.0
  %125 = vmatprep.subr.mxu0 0.0
  %126 = vmatpush2.msra.mxu0 0.0
  %127 = vmatprep.subr.mxu0 0.0
  %128 = vmatpush2.msra.mxu0 0.0
  %129 = vmatprep.subr.mxu0 0.0
  %130 = vmatpush2.msra.mxu0 0.0
  %131 = vmatprep.subr.mxu0 0.0
  %132 = vmatpush2.msra.mxu0 0.0
  %133 = vmatprep.subr.mxu0 0.0
  %134 = vmatpush2.msra.mxu0 0.0
  %135 = vmatprep.subr.mxu0 0.0
  %136 = vmatpush2.msra.mxu0 0.0
  %137 = vmatprep.subr.mxu0 0.0
  %138 = vmatpush2.msra.mxu0 0.0
  %139 = vmatprep.mubr.f32.mxu0 0.0
  %v140 = vand.u32 %v59, 4294901760
  %v141 = vsub.f32 %v59, %v140
  %v142 = vand.u32 %v141, 4294901760
  %v143 = vsub.f32 %v141, %v142
  %v144 = vand.u32 %v143, 4294901760
  %145 = vmatmul.mubr.f32.gmra.mxu0 %v144
  %v146 = vpop.f32.mrf.mxu0
  %v147 = vadd.f32 %v40, %v146
  %v148 = vpop.f32.mrf.mxu0
  %149 = vmatprep.mubr.f32.mxu0 0.0
  %v150 = vand.u32 %v62, 4294901760
  %v151 = vsub.f32 %v62, %v150
  %v152 = vand.u32 %v151, 4294901760
  %v153 = vsub.f32 %v151, %v152
  %v154 = vand.u32 %v153, 4294901760
  %155 = vmatmul.mubr.f32.gmra.mxu0 %v154
  %v156 = vpop.f32.mrf.mxu0
  %v157 = vadd.f32 %v45, %v156
  %v158 = vpop.f32.mrf.mxu0
  %159 = vmatprep.mubr.f32.mxu0 0.0
  %v160 = vand.u32 %v65, 4294901760
  %v161 = vsub.f32 %v65, %v160
  %v162 = vand.u32 %v161, 4294901760
  %v163 = vsub.f32 %v161, %v162
  %v164 = vand.u32 %v163, 4294901760
  %165 = vmatmul.mubr.f32.gmra.mxu0 %v164
  %v166 = vpop.f32.mrf.mxu0
  %v167 = vadd.f32 %v50, %v166
  %v168 = vpop.f32.mrf.mxu0
  %169 = vmatprep.mubr.f32.mxu0 0.0
  %v170 = vand.u32 %v68, 4294901760
  %v171 = vsub.f32 %v68, %v170
  %v172 = vand.u32 %v171, 4294901760
  %v173 = vsub.f32 %v171, %v172
  %v174 = vand.u32 %v173, 4294901760
  %175 = vmatmul.mubr.f32.gmra.mxu0 %v174
  %v176 = vpop.f32.mrf.mxu0
  %v177 = vadd.f32 %v55, %v176
  %v178 = vpop.f32.mrf.mxu0
  %179 = vdwg.mxu0
  %180 = vmatprep.subr.mxu0 0.0
  %181 = vmatpush1.msra.mxu0 0.0
  %182 = vmatprep.subr.mxu0 0.0
  %183 = vmatpush1.msra.mxu0 0.0
  %184 = vmatprep.subr.mxu0 0.0
  %185 = vmatpush1.msra.mxu0 0.0
  %186 = vmatprep.subr.mxu0 0.0
  %187 = vmatpush1.msra.mxu0 0.0
  %188 = vmatprep.subr.mxu0 0.0
  %189 = vmatpush1.msra.mxu0 0.0
  %190 = vmatprep.subr.mxu0 0.0
  %191 = vmatpush1.msra.mxu0 0.0
  %192 = vmatprep.subr.mxu0 0.0
  %193 = vmatpush1.msra.mxu0 0.0
  %194 = vmatprep.subr.mxu0 0.0
  %195 = vmatpush1.msra.mxu0 0.0
  %196 = vmatprep.subr.mxu0 0.0
  %197 = vmatpush1.msra.mxu0 0.0
  %198 = vmatprep.subr.mxu0 0.0
  %199 = vmatpush1.msra.mxu0 0.0
  %200 = vmatprep.subr.mxu0 0.0
  %201 = vmatpush1.msra.mxu0 0.0
  %202 = vmatprep.subr.mxu0 0.0
  %203 = vmatpush1.msra.mxu0 0.0
  %204 = vmatprep.subr.mxu0 0.0
  %205 = vmatpush1.msra.mxu0 0.0
  %206 = vmatprep.subr.mxu0 0.0
  %207 = vmatpush1.msra.mxu0 0.0
  %208 = vmatprep.subr.mxu0 0.0
  %209 = vmatpush1.msra.mxu0 0.0
  %210 = vmatprep.subr.mxu0 0.0
  %v211 = vand.u32 %v72, 4294901760
  %v212 = vsub.f32 %v72, %v211
  %v213 = vand.u32 %v212, 4294901760
  %v214 = vsub.f32 %v212, %v213
  %v215 = vand.u32 %v214, 4294901760
  %216 = vmatpush1.msra.mxu0 %v215
  %217 = vmatprep.subr.mxu0 0.0
  %218 = vmatpush2.msra.mxu0 0.0
  %219 = vmatprep.subr.mxu0 0.0
  %220 = vmatpush2.msra.mxu0 0.0
  %221 = vmatprep.subr.mxu0 0.0
  %222 = vmatpush2.msra.mxu0 0.0
  %223 = vmatprep.subr.mxu0 0.0
  %224 = vmatpush2.msra.mxu0 0.0
  %225 = vmatprep.subr.mxu0 0.0
  %226 = vmatpush2.msra.mxu0 0.0
  %227 = vmatprep.subr.mxu0 0.0
  %228 = vmatpush2.msra.mxu0 0.0
  %229 = vmatprep.subr.mxu0 0.0
  %230 = vmatpush2.msra.mxu0 0.0
  %231 = vmatprep.subr.mxu0 0.0
  %232 = vmatpush2.msra.mxu0 0.0
  %233 = vmatprep.subr.mxu0 0.0
  %234 = vmatpush2.msra.mxu0 0.0
  %235 = vmatprep.subr.mxu0 0.0
  %236 = vmatpush2.msra.mxu0 0.0
  %237 = vmatprep.subr.mxu0 0.0
  %238 = vmatpush2.msra.mxu0 0.0
  %239 = vmatprep.subr.mxu0 0.0
  %240 = vmatpush2.msra.mxu0 0.0
  %241 = vmatprep.subr.mxu0 0.0
  %242 = vmatpush2.msra.mxu0 0.0
  %243 = vmatprep.subr.mxu0 0.0
  %244 = vmatpush2.msra.mxu0 0.0
  %245 = vmatprep.subr.mxu0 0.0
  %246 = vmatpush2.msra.mxu0 0.0
  %247 = vmatprep.subr.mxu0 0.0
  %248 = vmatpush2.msra.mxu0 0.0
  %249 = vmatprep.mubr.f32.mxu0 0.0
  %v250 = vand.u32 %v59, 4294901760
  %251 = vmatmul.mubr.f32.gmra.mxu0 %v250
  %v252 = vpop.f32.mrf.mxu0
  %v253 = vadd.f32 %v147, %v252
  %v254 = vpop.f32.mrf.mxu0
  %255 = vmatprep.mubr.f32.mxu0 0.0
  %v256 = vand.u32 %v62, 4294901760
  %257 = vmatmul.mubr.f32.gmra.mxu0 %v256
  %v258 = vpop.f32.mrf.mxu0
  %v259 = vadd.f32 %v157, %v258
  %v260 = vpop.f32.mrf.mxu0
  %261 = vmatprep.mubr.f32.mxu0 0.0
  %v262 = vand.u32 %v65, 4294901760
  %263 = vmatmul.mubr.f32.gmra.mxu0 %v262
  %v264 = vpop.f32.mrf.mxu0
  %v265 = vadd.f32 %v167, %v264
  %v266 = vpop.f32.mrf.mxu0
  %267 = vmatprep.mubr.f32.mxu0 0.0
  %v268 = vand.u32 %v68, 4294901760
  %269 = vmatmul.mubr.f32.gmra.mxu0 %v268
  %v270 = vpop.f32.mrf.mxu0
  %v271 = vadd.f32 %v177, %v270
  %v272 = vpop.f32.mrf.mxu0
  %273 = vdwg.mxu0
  %274 = vmatprep.subr.mxu0 0.0
  %275 = vmatpush1.msra.mxu0 0.0
  %276 = vmatprep.subr.mxu0 0.0
  %277 = vmatpush1.msra.mxu0 0.0
  %278 = vmatprep.subr.mxu0 0.0
  %279 = vmatpush1.msra.mxu0 0.0
  %280 = vmatprep.subr.mxu0 0.0
  %281 = vmatpush1.msra.mxu0 0.0
  %282 = vmatprep.subr.mxu0 0.0
  %283 = vmatpush1.msra.mxu0 0.0
  %284 = vmatprep.subr.mxu0 0.0
  %285 = vmatpush1.msra.mxu0 0.0
  %286 = vmatprep.subr.mxu0 0.0
  %287 = vmatpush1.msra.mxu0 0.0
  %288 = vmatprep.subr.mxu0 0.0
  %289 = vmatpush1.msra.mxu0 0.0
  %290 = vmatprep.subr.mxu0 0.0
  %291 = vmatpush1.msra.mxu0 0.0
  %292 = vmatprep.subr.mxu0 0.0
  %293 = vmatpush1.msra.mxu0 0.0
  %294 = vmatprep.subr.mxu0 0.0
  %295 = vmatpush1.msra.mxu0 0.0
  %296 = vmatprep.subr.mxu0 0.0
  %297 = vmatpush1.msra.mxu0 0.0
  %298 = vmatprep.subr.mxu0 0.0
  %299 = vmatpush1.msra.mxu0 0.0
  %300 = vmatprep.subr.mxu0 0.0
  %301 = vmatpush1.msra.mxu0 0.0
  %302 = vmatprep.subr.mxu0 0.0
  %303 = vmatpush1.msra.mxu0 0.0
  %304 = vmatprep.subr.mxu0 0.0
  %v305 = vand.u32 %v72, 4294901760
  %v306 = vsub.f32 %v72, %v305
  %307 = vmatpush1.msra.mxu0 %v306
  %308 = vmatprep.subr.mxu0 0.0
  %309 = vmatpush2.msra.mxu0 0.0
  %310 = vmatprep.subr.mxu0 0.0
  %311 = vmatpush2.msra.mxu0 0.0
  %312 = vmatprep.subr.mxu0 0.0
  %313 = vmatpush2.msra.mxu0 0.0
  %314 = vmatprep.subr.mxu0 0.0
  %315 = vmatpush2.msra.mxu0 0.0
  %316 = vmatprep.subr.mxu0 0.0
  %317 = vmatpush2.msra.mxu0 0.0
  %318 = vmatprep.subr.mxu0 0.0
  %319 = vmatpush2.msra.mxu0 0.0
  %320 = vmatprep.subr.mxu0 0.0
  %321 = vmatpush2.msra.mxu0 0.0
  %322 = vmatprep.subr.mxu0 0.0
  %323 = vmatpush2.msra.mxu0 0.0
  %324 = vmatprep.subr.mxu0 0.0
  %325 = vmatpush2.msra.mxu0 0.0
  %326 = vmatprep.subr.mxu0 0.0
  %327 = vmatpush2.msra.mxu0 0.0
  %328 = vmatprep.subr.mxu0 0.0
  %329 = vmatpush2.msra.mxu0 0.0
  %330 = vmatprep.subr.mxu0 0.0
  %331 = vmatpush2.msra.mxu0 0.0
  %332 = vmatprep.subr.mxu0 0.0
  %333 = vmatpush2.msra.mxu0 0.0
  %334 = vmatprep.subr.mxu0 0.0
  %335 = vmatpush2.msra.mxu0 0.0
  %336 = vmatprep.subr.mxu0 0.0
  %337 = vmatpush2.msra.mxu0 0.0
  %338 = vmatprep.subr.mxu0 0.0
  %339 = vmatpush2.msra.mxu0 0.0
  %340 = vmatprep.mubr.f32.mxu0 0.0
  %v341 = vand.u32 %v59, 4294901760
  %v342 = vsub.f32 %v59, %v341
  %343 = vmatmul.mubr.f32.gmra.mxu0 %v342
  %v344 = vpop.f32.mrf.mxu0
  %v345 = vadd.f32 %v253, %v344
  %v346 = vpop.f32.mrf.mxu0
  %347 = vmatprep.mubr.f32.mxu0 0.0
  %v348 = vand.u32 %v62, 4294901760
  %v349 = vsub.f32 %v62, %v348
  %350 = vmatmul.mubr.f32.gmra.mxu0 %v349
  %v351 = vpop.f32.mrf.mxu0
  %v352 = vadd.f32 %v259, %v351
  %v353 = vpop.f32.mrf.mxu0
  %354 = vmatprep.mubr.f32.mxu0 0.0
  %v355 = vand.u32 %v65, 4294901760
  %v356 = vsub.f32 %v65, %v355
  %357 = vmatmul.mubr.f32.gmra.mxu0 %v356
  %v358 = vpop.f32.mrf.mxu0
  %v359 = vadd.f32 %v265, %v358
  %v360 = vpop.f32.mrf.mxu0
  %361 = vmatprep.mubr.f32.mxu0 0.0
  %v362 = vand.u32 %v68, 4294901760
  %v363 = vsub.f32 %v68, %v362
  %364 = vmatmul.mubr.f32.gmra.mxu0 %v363
  %v365 = vpop.f32.mrf.mxu0
  %v366 = vadd.f32 %v271, %v365
  %v367 = vpop.f32.mrf.mxu0
  %368 = vdwg.mxu0
  %369 = vmatprep.subr.mxu0 0.0
  %370 = vmatpush1.msra.mxu0 0.0
  %371 = vmatprep.subr.mxu0 0.0
  %372 = vmatpush1.msra.mxu0 0.0
  %373 = vmatprep.subr.mxu0 0.0
  %374 = vmatpush1.msra.mxu0 0.0
  %375 = vmatprep.subr.mxu0 0.0
  %376 = vmatpush1.msra.mxu0 0.0
  %377 = vmatprep.subr.mxu0 0.0
  %378 = vmatpush1.msra.mxu0 0.0
  %379 = vmatprep.subr.mxu0 0.0
  %380 = vmatpush1.msra.mxu0 0.0
  %381 = vmatprep.subr.mxu0 0.0
  %382 = vmatpush1.msra.mxu0 0.0
  %383 = vmatprep.subr.mxu0 0.0
  %384 = vmatpush1.msra.mxu0 0.0
  %385 = vmatprep.subr.mxu0 0.0
  %386 = vmatpush1.msra.mxu0 0.0
  %387 = vmatprep.subr.mxu0 0.0
  %388 = vmatpush1.msra.mxu0 0.0
  %389 = vmatprep.subr.mxu0 0.0
  %390 = vmatpush1.msra.mxu0 0.0
  %391 = vmatprep.subr.mxu0 0.0
  %392 = vmatpush1.msra.mxu0 0.0
  %393 = vmatprep.subr.mxu0 0.0
  %394 = vmatpush1.msra.mxu0 0.0
  %395 = vmatprep.subr.mxu0 0.0
  %396 = vmatpush1.msra.mxu0 0.0
  %397 = vmatprep.subr.mxu0 0.0
  %398 = vmatpush1.msra.mxu0 0.0
  %399 = vmatprep.subr.mxu0 0.0
  %v400 = vand.u32 %v72, 4294901760
  %401 = vmatpush1.msra.mxu0 %v400
  %402 = vmatprep.subr.mxu0 0.0
  %403 = vmatpush2.msra.mxu0 0.0
  %404 = vmatprep.subr.mxu0 0.0
  %405 = vmatpush2.msra.mxu0 0.0
  %406 = vmatprep.subr.mxu0 0.0
  %407 = vmatpush2.msra.mxu0 0.0
  %408 = vmatprep.subr.mxu0 0.0
  %409 = vmatpush2.msra.mxu0 0.0
  %410 = vmatprep.subr.mxu0 0.0
  %411 = vmatpush2.msra.mxu0 0.0
  %412 = vmatprep.subr.mxu0 0.0
  %413 = vmatpush2.msra.mxu0 0.0
  %414 = vmatprep.subr.mxu0 0.0
  %415 = vmatpush2.msra.mxu0 0.0
  %416 = vmatprep.subr.mxu0 0.0
  %417 = vmatpush2.msra.mxu0 0.0
  %418 = vmatprep.subr.mxu0 0.0
  %419 = vmatpush2.msra.mxu0 0.0
  %420 = vmatprep.subr.mxu0 0.0
  %421 = vmatpush2.msra.mxu0 0.0
  %422 = vmatprep.subr.mxu0 0.0
  %423 = vmatpush2.msra.mxu0 0.0
  %424 = vmatprep.subr.mxu0 0.0
  %425 = vmatpush2.msra.mxu0 0.0
  %426 = vmatprep.subr.mxu0 0.0
  %427 = vmatpush2.msra.mxu0 0.0
  %428 = vmatprep.subr.mxu0 0.0
  %429 = vmatpush2.msra.mxu0 0.0
  %430 = vmatprep.subr.mxu0 0.0
  %431 = vmatpush2.msra.mxu0 0.0
  %432 = vmatprep.subr.mxu0 0.0
  %433 = vmatpush2.msra.mxu0 0.0
  %434 = vmatprep.mubr.f32.mxu0 0.0
  %v435 = vand.u32 %v59, 4294901760
  %v436 = vsub.f32 %v59, %v435
  %v437 = vand.u32 %v436, 4294901760
  %438 = vmatmul.mubr.f32.gmra.mxu0 %v437
  %v439 = vpop.f32.mrf.mxu0
  %v440 = vadd.f32 %v345, %v439
  %v441 = vpop.f32.mrf.mxu0
  %442 = vmatprep.mubr.f32.mxu0 0.0
  %v443 = vand.u32 %v62, 4294901760
  %v444 = vsub.f32 %v62, %v443
  %v445 = vand.u32 %v444, 4294901760
  %446 = vmatmul.mubr.f32.gmra.mxu0 %v445
  %v447 = vpop.f32.mrf.mxu0
  %v448 = vadd.f32 %v352, %v447
  %v449 = vpop.f32.mrf.mxu0
  %450 = vmatprep.mubr.f32.mxu0 0.0
  %v451 = vand.u32 %v65, 4294901760
  %v452 = vsub.f32 %v65, %v451
  %v453 = vand.u32 %v452, 4294901760
  %454 = vmatmul.mubr.f32.gmra.mxu0 %v453
  %v455 = vpop.f32.mrf.mxu0
  %v456 = vadd.f32 %v359, %v455
  %v457 = vpop.f32.mrf.mxu0
  %458 = vmatprep.mubr.f32.mxu0 0.0
  %v459 = vand.u32 %v68, 4294901760
  %v460 = vsub.f32 %v68, %v459
  %v461 = vand.u32 %v460, 4294901760
  %462 = vmatmul.mubr.f32.gmra.mxu0 %v461
  %v463 = vpop.f32.mrf.mxu0
  %v464 = vadd.f32 %v366, %v463
  %v465 = vpop.f32.mrf.mxu0
  %466 = vdwg.mxu0
  %467 = vmatprep.subr.mxu0 0.0
  %468 = vmatpush1.msra.mxu0 0.0
  %469 = vmatprep.subr.mxu0 0.0
  %470 = vmatpush1.msra.mxu0 0.0
  %471 = vmatprep.subr.mxu0 0.0
  %472 = vmatpush1.msra.mxu0 0.0
  %473 = vmatprep.subr.mxu0 0.0
  %474 = vmatpush1.msra.mxu0 0.0
  %475 = vmatprep.subr.mxu0 0.0
  %476 = vmatpush1.msra.mxu0 0.0
  %477 = vmatprep.subr.mxu0 0.0
  %478 = vmatpush1.msra.mxu0 0.0
  %479 = vmatprep.subr.mxu0 0.0
  %480 = vmatpush1.msra.mxu0 0.0
  %481 = vmatprep.subr.mxu0 0.0
  %482 = vmatpush1.msra.mxu0 0.0
  %483 = vmatprep.subr.mxu0 0.0
  %484 = vmatpush1.msra.mxu0 0.0
  %485 = vmatprep.subr.mxu0 0.0
  %486 = vmatpush1.msra.mxu0 0.0
  %487 = vmatprep.subr.mxu0 0.0
  %488 = vmatpush1.msra.mxu0 0.0
  %489 = vmatprep.subr.mxu0 0.0
  %490 = vmatpush1.msra.mxu0 0.0
  %491 = vmatprep.subr.mxu0 0.0
  %492 = vmatpush1.msra.mxu0 0.0
  %493 = vmatprep.subr.mxu0 0.0
  %494 = vmatpush1.msra.mxu0 0.0
  %495 = vmatprep.subr.mxu0 0.0
  %496 = vmatpush1.msra.mxu0 0.0
  %497 = vmatprep.subr.mxu0 0.0
  %v498 = vand.u32 %v72, 4294901760
  %v499 = vsub.f32 %v72, %v498
  %v500 = vand.u32 %v499, 4294901760
  %501 = vmatpush1.msra.mxu0 %v500
  %502 = vmatprep.subr.mxu0 0.0
  %503 = vmatpush2.msra.mxu0 0.0
  %504 = vmatprep.subr.mxu0 0.0
  %505 = vmatpush2.msra.mxu0 0.0
  %506 = vmatprep.subr.mxu0 0.0
  %507 = vmatpush2.msra.mxu0 0.0
  %508 = vmatprep.subr.mxu0 0.0
  %509 = vmatpush2.msra.mxu0 0.0
  %510 = vmatprep.subr.mxu0 0.0
  %511 = vmatpush2.msra.mxu0 0.0
  %512 = vmatprep.subr.mxu0 0.0
  %513 = vmatpush2.msra.mxu0 0.0
  %514 = vmatprep.subr.mxu0 0.0
  %515 = vmatpush2.msra.mxu0 0.0
  %516 = vmatprep.subr.mxu0 0.0
  %517 = vmatpush2.msra.mxu0 0.0
  %518 = vmatprep.subr.mxu0 0.0
  %519 = vmatpush2.msra.mxu0 0.0
  %520 = vmatprep.subr.mxu0 0.0
  %521 = vmatpush2.msra.mxu0 0.0
  %522 = vmatprep.subr.mxu0 0.0
  %523 = vmatpush2.msra.mxu0 0.0
  %524 = vmatprep.subr.mxu0 0.0
  %525 = vmatpush2.msra.mxu0 0.0
  %526 = vmatprep.subr.mxu0 0.0
  %527 = vmatpush2.msra.mxu0 0.0
  %528 = vmatprep.subr.mxu0 0.0
  %529 = vmatpush2.msra.mxu0 0.0
  %530 = vmatprep.subr.mxu0 0.0
  %531 = vmatpush2.msra.mxu0 0.0
  %532 = vmatprep.subr.mxu0 0.0
  %533 = vmatpush2.msra.mxu0 0.0
  %534 = vmatprep.mubr.f32.mxu0 0.0
  %v535 = vand.u32 %v59, 4294901760
  %536 = vmatmul.mubr.f32.gmra.mxu0 %v535
  %v537 = vpop.f32.mrf.mxu0
  %v538 = vadd.f32 %v440, %v537
  %v539 = vpop.f32.mrf.mxu0
  %540 = vmatprep.mubr.f32.mxu0 0.0
  %v541 = vand.u32 %v62, 4294901760
  %542 = vmatmul.mubr.f32.gmra.mxu0 %v541
  %v543 = vpop.f32.mrf.mxu0
  %v544 = vadd.f32 %v448, %v543
  %v545 = vpop.f32.mrf.mxu0
  %546 = vmatprep.mubr.f32.mxu0 0.0
  %v547 = vand.u32 %v65, 4294901760
  %548 = vmatmul.mubr.f32.gmra.mxu0 %v547
  %v549 = vpop.f32.mrf.mxu0
  %v550 = vadd.f32 %v456, %v549
  %v551 = vpop.f32.mrf.mxu0
  %552 = vmatprep.mubr.f32.mxu0 0.0
  %v553 = vand.u32 %v68, 4294901760
  %554 = vmatmul.mubr.f32.gmra.mxu0 %v553
  %v555 = vpop.f32.mrf.mxu0
  %v556 = vadd.f32 %v464, %v555
  %v557 = vpop.f32.mrf.mxu0
  %558 = vdwg.mxu0
  %559 = vmatprep.subr.mxu0 0.0
  %560 = vmatpush1.msra.mxu0 0.0
  %561 = vmatprep.subr.mxu0 0.0
  %562 = vmatpush1.msra.mxu0 0.0
  %563 = vmatprep.subr.mxu0 0.0
  %564 = vmatpush1.msra.mxu0 0.0
  %565 = vmatprep.subr.mxu0 0.0
  %566 = vmatpush1.msra.mxu0 0.0
  %567 = vmatprep.subr.mxu0 0.0
  %568 = vmatpush1.msra.mxu0 0.0
  %569 = vmatprep.subr.mxu0 0.0
  %570 = vmatpush1.msra.mxu0 0.0
  %571 = vmatprep.subr.mxu0 0.0
  %572 = vmatpush1.msra.mxu0 0.0
  %573 = vmatprep.subr.mxu0 0.0
  %574 = vmatpush1.msra.mxu0 0.0
  %575 = vmatprep.subr.mxu0 0.0
  %576 = vmatpush1.msra.mxu0 0.0
  %577 = vmatprep.subr.mxu0 0.0
  %578 = vmatpush1.msra.mxu0 0.0
  %579 = vmatprep.subr.mxu0 0.0
  %580 = vmatpush1.msra.mxu0 0.0
  %581 = vmatprep.subr.mxu0 0.0
  %582 = vmatpush1.msra.mxu0 0.0
  %583 = vmatprep.subr.mxu0 0.0
  %584 = vmatpush1.msra.mxu0 0.0
  %585 = vmatprep.subr.mxu0 0.0
  %586 = vmatpush1.msra.mxu0 0.0
  %587 = vmatprep.subr.mxu0 0.0
  %588 = vmatpush1.msra.mxu0 0.0
  %589 = vmatprep.subr.mxu0 0.0
  %v590 = vand.u32 %v72, 4294901760
  %591 = vmatpush1.msra.mxu0 %v590
  %592 = vmatprep.subr.mxu0 0.0
  %593 = vmatpush2.msra.mxu0 0.0
  %594 = vmatprep.subr.mxu0 0.0
  %595 = vmatpush2.msra.mxu0 0.0
  %596 = vmatprep.subr.mxu0 0.0
  %597 = vmatpush2.msra.mxu0 0.0
  %598 = vmatprep.subr.mxu0 0.0
  %599 = vmatpush2.msra.mxu0 0.0
  %600 = vmatprep.subr.mxu0 0.0
  %601 = vmatpush2.msra.mxu0 0.0
  %602 = vmatprep.subr.mxu0 0.0
  %603 = vmatpush2.msra.mxu0 0.0
  %604 = vmatprep.subr.mxu0 0.0
  %605 = vmatpush2.msra.mxu0 0.0
  %606 = vmatprep.subr.mxu0 0.0
  %607 = vmatpush2.msra.mxu0 0.0
  %608 = vmatprep.subr.mxu0 0.0
  %609 = vmatpush2.msra.mxu0 0.0
  %610 = vmatprep.subr.mxu0 0.0
  %611 = vmatpush2.msra.mxu0 0.0
  %612 = vmatprep.subr.mxu0 0.0
  %613 = vmatpush2.msra.mxu0 0.0
  %614 = vmatprep.subr.mxu0 0.0
  %615 = vmatpush2.msra.mxu0 0.0
  %616 = vmatprep.subr.mxu0 0.0
  %617 = vmatpush2.msra.mxu0 0.0
  %618 = vmatprep.subr.mxu0 0.0
  %619 = vmatpush2.msra.mxu0 0.0
  %620 = vmatprep.subr.mxu0 0.0
  %621 = vmatpush2.msra.mxu0 0.0
  %622 = vmatprep.subr.mxu0 0.0
  %623 = vmatpush2.msra.mxu0 0.0
  %624 = vmatprep.mubr.f32.mxu0 0.0
  %v625 = vand.u32 %v59, 4294901760
  %626 = vmatmul.mubr.f32.gmra.mxu0 %v625
  %v627 = vpop.f32.mrf.mxu0
  %v628 = vadd.f32 %v538, %v627
  %v629 = vpop.f32.mrf.mxu0
  %630 = vmatprep.mubr.f32.mxu0 0.0
  %v631 = vand.u32 %v62, 4294901760
  %632 = vmatmul.mubr.f32.gmra.mxu0 %v631
  %v633 = vpop.f32.mrf.mxu0
  %v634 = vadd.f32 %v544, %v633
  %v635 = vpop.f32.mrf.mxu0
  %636 = vmatprep.mubr.f32.mxu0 0.0
  %v637 = vand.u32 %v65, 4294901760
  %638 = vmatmul.mubr.f32.gmra.mxu0 %v637
  %v639 = vpop.f32.mrf.mxu0
  %v640 = vadd.f32 %v550, %v639
  %v641 = vpop.f32.mrf.mxu0
  %642 = vmatprep.mubr.f32.mxu0 0.0
  %v643 = vand.u32 %v68, 4294901760
  %644 = vmatmul.mubr.f32.gmra.mxu0 %v643
  %v645 = vpop.f32.mrf.mxu0
  %v646 = vadd.f32 %v556, %v645
  %v647 = vpop.f32.mrf.mxu0
  %648 = vdwg.mxu0
  %v649 = vmin.f32 %v628, 0.0
  %v650 = vmin.f32 %v634, 0.0
  %v651 = vmin.f32 %v640, 0.0
  %v652 = vmin.f32 %v646, 0.0
  %v653 = vmul.f32 %v649, 1.442695
  %v654 = vpow.pop %v653
  %v655 = vmul.f32 %v650, 1.442695
  %v656 = vpow.pop %v655
  %v657 = vmul.f32 %v651, 1.442695
  %v658 = vpow.pop %v657
  %v659 = vmul.f32 %v652, 1.442695
  %v660 = vpow.pop %v659
  %v661 = vsub.f32 %v654, 1.0
  %v662 = vsub.f32 %v656, 1.0
  %v663 = vsub.f32 %v658, 1.0
  %v664 = vsub.f32 %v660, 1.0
  %v665 = vmul.f32 %v661, 1.6732632
  %v666 = vmul.f32 %v662, 1.6732632
  %v667 = vmul.f32 %v663, 1.6732632
  %v668 = vmul.f32 %v664, 1.6732632
  %vm669 = vcmp.gt.f32.partialorder %v628, 0.0
  %vm670 = vcmp.gt.f32.partialorder %v634, 0.0
  %vm671 = vcmp.gt.f32.partialorder %v640, 0.0
  %vm672 = vcmp.gt.f32.partialorder %v646, 0.0
  %v673 = vsel %vm669, %v628, %v665
  %v674 = vsel %vm670, %v634, %v666
  %v675 = vsel %vm671, %v640, %v667
  %v676 = vsel %vm672, %v646, %v668
  %v677 = vld [vmem:[%s3] sm:$0xff]
  %v678 = vld [vmem:[%s3 + $0x8] sm:$0xff]
  %v679 = vld [vmem:[%s3 + $0x10] sm:$0xff]
  %v680 = vld [vmem:[%s3 + $0x18] sm:$0xff]
  %v681 = vld [vmem:[%s4] sm:$0xff]
  %v682 = vld [vmem:[%s4 + $0x8] sm:$0xff]
  %v683 = vld [vmem:[%s4 + $0x10] sm:$0xff]
  %v684 = vld [vmem:[%s4 + $0x18] sm:$0xff]
  %686 = vset.pattern.permute.xlu0 0
  %687 = vperm.xlu0 %686, %v681
  %v688 = vpop.permute.xlu0 %687
  %691 = vset.pattern.permute.xlu0 0
  %692 = vperm.xlu0 %691, %v682
  %v693 = vpop.permute.xlu0 %692
  %696 = vset.pattern.permute.xlu0 0
  %697 = vperm.xlu0 %696, %v683
  %v698 = vpop.permute.xlu0 %697
  %701 = vset.pattern.permute.xlu0 0
  %702 = vperm.xlu0 %701, %v684
  %v703 = vpop.permute.xlu0 %702
  %vm705 = vcmask 261120
  %v707 = vsel %vm705, %v677, 0
  %v710 = vsel %vm705, %v678, 0
  %v713 = vsel %vm705, %v679, 0
  %v716 = vsel %vm705, %v680, 0
  %718 = vmatprep.subr.mxu0 0.0
  %719 = vmatpush1.msra.mxu0 0.0
  %720 = vmatprep.subr.mxu0 0.0
  %721 = vmatpush1.msra.mxu0 0.0
  %722 = vmatprep.subr.mxu0 0.0
  %723 = vmatpush1.msra.mxu0 0.0
  %724 = vmatprep.subr.mxu0 0.0
  %725 = vmatpush1.msra.mxu0 0.0
  %726 = vmatprep.subr.mxu0 0.0
  %727 = vmatpush1.msra.mxu0 0.0
  %728 = vmatprep.subr.mxu0 0.0
  %729 = vmatpush1.msra.mxu0 0.0
  %730 = vmatprep.subr.mxu0 0.0
  %731 = vmatpush1.msra.mxu0 0.0
  %732 = vmatprep.subr.mxu0 0.0
  %733 = vmatpush1.msra.mxu0 0.0
  %734 = vmatprep.subr.mxu0 0.0
  %735 = vmatpush1.msra.mxu0 0.0
  %736 = vmatprep.subr.mxu0 0.0
  %737 = vmatpush1.msra.mxu0 0.0
  %738 = vmatprep.subr.mxu0 0.0
  %739 = vmatpush1.msra.mxu0 0.0
  %740 = vmatprep.subr.mxu0 0.0
  %741 = vmatpush1.msra.mxu0 0.0
  %742 = vmatprep.subr.mxu0 0.0
  %v743 = vand.u32 %v676, 4294901760
  %744 = vmatpush1.msra.mxu0 %v743
  %745 = vmatprep.subr.mxu0 0.0
  %v746 = vand.u32 %v675, 4294901760
  %747 = vmatpush1.msra.mxu0 %v746
  %748 = vmatprep.subr.mxu0 0.0
  %v749 = vand.u32 %v674, 4294901760
  %750 = vmatpush1.msra.mxu0 %v749
  %751 = vmatprep.subr.mxu0 0.0
  %v752 = vand.u32 %v673, 4294901760
  %753 = vmatpush1.msra.mxu0 %v752
  %754 = vmatprep.subr.mxu0 0.0
  %755 = vmatpush2.msra.mxu0 0.0
  %756 = vmatprep.subr.mxu0 0.0
  %757 = vmatpush2.msra.mxu0 0.0
  %758 = vmatprep.subr.mxu0 0.0
  %759 = vmatpush2.msra.mxu0 0.0
  %760 = vmatprep.subr.mxu0 0.0
  %761 = vmatpush2.msra.mxu0 0.0
  %762 = vmatprep.subr.mxu0 0.0
  %763 = vmatpush2.msra.mxu0 0.0
  %764 = vmatprep.subr.mxu0 0.0
  %765 = vmatpush2.msra.mxu0 0.0
  %766 = vmatprep.subr.mxu0 0.0
  %767 = vmatpush2.msra.mxu0 0.0
  %768 = vmatprep.subr.mxu0 0.0
  %769 = vmatpush2.msra.mxu0 0.0
  %770 = vmatprep.subr.mxu0 0.0
  %771 = vmatpush2.msra.mxu0 0.0
  %772 = vmatprep.subr.mxu0 0.0
  %773 = vmatpush2.msra.mxu0 0.0
  %774 = vmatprep.subr.mxu0 0.0
  %775 = vmatpush2.msra.mxu0 0.0
  %776 = vmatprep.subr.mxu0 0.0
  %777 = vmatpush2.msra.mxu0 0.0
  %778 = vmatprep.subr.mxu0 0.0
  %779 = vmatpush2.msra.mxu0 0.0
  %780 = vmatprep.subr.mxu0 0.0
  %781 = vmatpush2.msra.mxu0 0.0
  %782 = vmatprep.subr.mxu0 0.0
  %783 = vmatpush2.msra.mxu0 0.0
  %784 = vmatprep.subr.mxu0 0.0
  %785 = vmatpush2.msra.mxu0 0.0
  %786 = vmatprep.mubr.f32.mxu0 0.0
  %v787 = vand.u32 %v707, 4294901760
  %v788 = vsub.f32 %v707, %v787
  %v789 = vand.u32 %v788, 4294901760
  %v790 = vsub.f32 %v788, %v789
  %v791 = vand.u32 %v790, 4294901760
  %792 = vmatmul.mubr.f32.gmra.mxu0 %v791
  %v793 = vpop.f32.mrf.mxu0
  %v794 = vadd.f32 %v688, %v793
  %v795 = vpop.f32.mrf.mxu0
  %796 = vmatprep.mubr.f32.mxu0 0.0
  %v797 = vand.u32 %v710, 4294901760
  %v798 = vsub.f32 %v710, %v797
  %v799 = vand.u32 %v798, 4294901760
  %v800 = vsub.f32 %v798, %v799
  %v801 = vand.u32 %v800, 4294901760
  %802 = vmatmul.mubr.f32.gmra.mxu0 %v801
  %v803 = vpop.f32.mrf.mxu0
  %v804 = vadd.f32 %v693, %v803
  %v805 = vpop.f32.mrf.mxu0
  %806 = vmatprep.mubr.f32.mxu0 0.0
  %v807 = vand.u32 %v713, 4294901760
  %v808 = vsub.f32 %v713, %v807
  %v809 = vand.u32 %v808, 4294901760
  %v810 = vsub.f32 %v808, %v809
  %v811 = vand.u32 %v810, 4294901760
  %812 = vmatmul.mubr.f32.gmra.mxu0 %v811
  %v813 = vpop.f32.mrf.mxu0
  %v814 = vadd.f32 %v698, %v813
  %v815 = vpop.f32.mrf.mxu0
  %816 = vmatprep.mubr.f32.mxu0 0.0
  %v817 = vand.u32 %v716, 4294901760
  %v818 = vsub.f32 %v716, %v817
  %v819 = vand.u32 %v818, 4294901760
  %v820 = vsub.f32 %v818, %v819
  %v821 = vand.u32 %v820, 4294901760
  %822 = vmatmul.mubr.f32.gmra.mxu0 %v821
  %v823 = vpop.f32.mrf.mxu0
  %v824 = vadd.f32 %v703, %v823
  %v825 = vpop.f32.mrf.mxu0
  %826 = vdwg.mxu0
  %827 = vmatprep.subr.mxu0 0.0
  %828 = vmatpush1.msra.mxu0 0.0
  %829 = vmatprep.subr.mxu0 0.0
  %830 = vmatpush1.msra.mxu0 0.0
  %831 = vmatprep.subr.mxu0 0.0
  %832 = vmatpush1.msra.mxu0 0.0
  %833 = vmatprep.subr.mxu0 0.0
  %834 = vmatpush1.msra.mxu0 0.0
  %835 = vmatprep.subr.mxu0 0.0
  %836 = vmatpush1.msra.mxu0 0.0
  %837 = vmatprep.subr.mxu0 0.0
  %838 = vmatpush1.msra.mxu0 0.0
  %839 = vmatprep.subr.mxu0 0.0
  %840 = vmatpush1.msra.mxu0 0.0
  %841 = vmatprep.subr.mxu0 0.0
  %842 = vmatpush1.msra.mxu0 0.0
  %843 = vmatprep.subr.mxu0 0.0
  %844 = vmatpush1.msra.mxu0 0.0
  %845 = vmatprep.subr.mxu0 0.0
  %846 = vmatpush1.msra.mxu0 0.0
  %847 = vmatprep.subr.mxu0 0.0
  %848 = vmatpush1.msra.mxu0 0.0
  %849 = vmatprep.subr.mxu0 0.0
  %850 = vmatpush1.msra.mxu0 0.0
  %851 = vmatprep.subr.mxu0 0.0
  %v852 = vand.u32 %v676, 4294901760
  %v853 = vsub.f32 %v676, %v852
  %v854 = vand.u32 %v853, 4294901760
  %v855 = vsub.f32 %v853, %v854
  %v856 = vand.u32 %v855, 4294901760
  %857 = vmatpush1.msra.mxu0 %v856
  %858 = vmatprep.subr.mxu0 0.0
  %v859 = vand.u32 %v675, 4294901760
  %v860 = vsub.f32 %v675, %v859
  %v861 = vand.u32 %v860, 4294901760
  %v862 = vsub.f32 %v860, %v861
  %v863 = vand.u32 %v862, 4294901760
  %864 = vmatpush1.msra.mxu0 %v863
  %865 = vmatprep.subr.mxu0 0.0
  %v866 = vand.u32 %v674, 4294901760
  %v867 = vsub.f32 %v674, %v866
  %v868 = vand.u32 %v867, 4294901760
  %v869 = vsub.f32 %v867, %v868
  %v870 = vand.u32 %v869, 4294901760
  %871 = vmatpush1.msra.mxu0 %v870
  %872 = vmatprep.subr.mxu0 0.0
  %v873 = vand.u32 %v673, 4294901760
  %v874 = vsub.f32 %v673, %v873
  %v875 = vand.u32 %v874, 4294901760
  %v876 = vsub.f32 %v874, %v875
  %v877 = vand.u32 %v876, 4294901760
  %878 = vmatpush1.msra.mxu0 %v877
  %879 = vmatprep.subr.mxu0 0.0
  %880 = vmatpush2.msra.mxu0 0.0
  %881 = vmatprep.subr.mxu0 0.0
  %882 = vmatpush2.msra.mxu0 0.0
  %883 = vmatprep.subr.mxu0 0.0
  %884 = vmatpush2.msra.mxu0 0.0
  %885 = vmatprep.subr.mxu0 0.0
  %886 = vmatpush2.msra.mxu0 0.0
  %887 = vmatprep.subr.mxu0 0.0
  %888 = vmatpush2.msra.mxu0 0.0
  %889 = vmatprep.subr.mxu0 0.0
  %890 = vmatpush2.msra.mxu0 0.0
  %891 = vmatprep.subr.mxu0 0.0
  %892 = vmatpush2.msra.mxu0 0.0
  %893 = vmatprep.subr.mxu0 0.0
  %894 = vmatpush2.msra.mxu0 0.0
  %895 = vmatprep.subr.mxu0 0.0
  %896 = vmatpush2.msra.mxu0 0.0
  %897 = vmatprep.subr.mxu0 0.0
  %898 = vmatpush2.msra.mxu0 0.0
  %899 = vmatprep.subr.mxu0 0.0
  %900 = vmatpush2.msra.mxu0 0.0
  %901 = vmatprep.subr.mxu0 0.0
  %902 = vmatpush2.msra.mxu0 0.0
  %903 = vmatprep.subr.mxu0 0.0
  %904 = vmatpush2.msra.mxu0 0.0
  %905 = vmatprep.subr.mxu0 0.0
  %906 = vmatpush2.msra.mxu0 0.0
  %907 = vmatprep.subr.mxu0 0.0
  %908 = vmatpush2.msra.mxu0 0.0
  %909 = vmatprep.subr.mxu0 0.0
  %910 = vmatpush2.msra.mxu0 0.0
  %911 = vmatprep.mubr.f32.mxu0 0.0
  %v912 = vand.u32 %v707, 4294901760
  %913 = vmatmul.mubr.f32.gmra.mxu0 %v912
  %v914 = vpop.f32.mrf.mxu0
  %v915 = vadd.f32 %v794, %v914
  %v916 = vpop.f32.mrf.mxu0
  %917 = vmatprep.mubr.f32.mxu0 0.0
  %v918 = vand.u32 %v710, 4294901760
  %919 = vmatmul.mubr.f32.gmra.mxu0 %v918
  %v920 = vpop.f32.mrf.mxu0
  %v921 = vadd.f32 %v804, %v920
  %v922 = vpop.f32.mrf.mxu0
  %923 = vmatprep.mubr.f32.mxu0 0.0
  %v924 = vand.u32 %v713, 4294901760
  %925 = vmatmul.mubr.f32.gmra.mxu0 %v924
  %v926 = vpop.f32.mrf.mxu0
  %v927 = vadd.f32 %v814, %v926
  %v928 = vpop.f32.mrf.mxu0
  %929 = vmatprep.mubr.f32.mxu0 0.0
  %v930 = vand.u32 %v716, 4294901760
  %931 = vmatmul.mubr.f32.gmra.mxu0 %v930
  %v932 = vpop.f32.mrf.mxu0
  %v933 = vadd.f32 %v824, %v932
  %v934 = vpop.f32.mrf.mxu0
  %935 = vdwg.mxu0
  %936 = vmatprep.subr.mxu0 0.0
  %937 = vmatpush1.msra.mxu0 0.0
  %938 = vmatprep.subr.mxu0 0.0
  %939 = vmatpush1.msra.mxu0 0.0
  %940 = vmatprep.subr.mxu0 0.0
  %941 = vmatpush1.msra.mxu0 0.0
  %942 = vmatprep.subr.mxu0 0.0
  %943 = vmatpush1.msra.mxu0 0.0
  %944 = vmatprep.subr.mxu0 0.0
  %945 = vmatpush1.msra.mxu0 0.0
  %946 = vmatprep.subr.mxu0 0.0
  %947 = vmatpush1.msra.mxu0 0.0
  %948 = vmatprep.subr.mxu0 0.0
  %949 = vmatpush1.msra.mxu0 0.0
  %950 = vmatprep.subr.mxu0 0.0
  %951 = vmatpush1.msra.mxu0 0.0
  %952 = vmatprep.subr.mxu0 0.0
  %953 = vmatpush1.msra.mxu0 0.0
  %954 = vmatprep.subr.mxu0 0.0
  %955 = vmatpush1.msra.mxu0 0.0
  %956 = vmatprep.subr.mxu0 0.0
  %957 = vmatpush1.msra.mxu0 0.0
  %958 = vmatprep.subr.mxu0 0.0
  %959 = vmatpush1.msra.mxu0 0.0
  %960 = vmatprep.subr.mxu0 0.0
  %v961 = vand.u32 %v676, 4294901760
  %v962 = vsub.f32 %v676, %v961
  %963 = vmatpush1.msra.mxu0 %v962
  %964 = vmatprep.subr.mxu0 0.0
  %v965 = vand.u32 %v675, 4294901760
  %v966 = vsub.f32 %v675, %v965
  %967 = vmatpush1.msra.mxu0 %v966
  %968 = vmatprep.subr.mxu0 0.0
  %v969 = vand.u32 %v674, 4294901760
  %v970 = vsub.f32 %v674, %v969
  %971 = vmatpush1.msra.mxu0 %v970
  %972 = vmatprep.subr.mxu0 0.0
  %v973 = vand.u32 %v673, 4294901760
  %v974 = vsub.f32 %v673, %v973
  %975 = vmatpush1.msra.mxu0 %v974
  %976 = vmatprep.subr.mxu0 0.0
  %977 = vmatpush2.msra.mxu0 0.0
  %978 = vmatprep.subr.mxu0 0.0
  %979 = vmatpush2.msra.mxu0 0.0
  %980 = vmatprep.subr.mxu0 0.0
  %981 = vmatpush2.msra.mxu0 0.0
  %982 = vmatprep.subr.mxu0 0.0
  %983 = vmatpush2.msra.mxu0 0.0
  %984 = vmatprep.subr.mxu0 0.0
  %985 = vmatpush2.msra.mxu0 0.0
  %986 = vmatprep.subr.mxu0 0.0
  %987 = vmatpush2.msra.mxu0 0.0
  %988 = vmatprep.subr.mxu0 0.0
  %989 = vmatpush2.msra.mxu0 0.0
  %990 = vmatprep.subr.mxu0 0.0
  %991 = vmatpush2.msra.mxu0 0.0
  %992 = vmatprep.subr.mxu0 0.0
  %993 = vmatpush2.msra.mxu0 0.0
  %994 = vmatprep.subr.mxu0 0.0
  %995 = vmatpush2.msra.mxu0 0.0
  %996 = vmatprep.subr.mxu0 0.0
  %997 = vmatpush2.msra.mxu0 0.0
  %998 = vmatprep.subr.mxu0 0.0
  %999 = vmatpush2.msra.mxu0 0.0
  %1000 = vmatprep.subr.mxu0 0.0
  %1001 = vmatpush2.msra.mxu0 0.0
  %1002 = vmatprep.subr.mxu0 0.0
  %1003 = vmatpush2.msra.mxu0 0.0
  %1004 = vmatprep.subr.mxu0 0.0
  %1005 = vmatpush2.msra.mxu0 0.0
  %1006 = vmatprep.subr.mxu0 0.0
  %1007 = vmatpush2.msra.mxu0 0.0
  %1008 = vmatprep.mubr.f32.mxu0 0.0
  %v1009 = vand.u32 %v707, 4294901760
  %v1010 = vsub.f32 %v707, %v1009
  %1011 = vmatmul.mubr.f32.gmra.mxu0 %v1010
  %v1012 = vpop.f32.mrf.mxu0
  %v1013 = vadd.f32 %v915, %v1012
  %v1014 = vpop.f32.mrf.mxu0
  %1015 = vmatprep.mubr.f32.mxu0 0.0
  %v1016 = vand.u32 %v710, 4294901760
  %v1017 = vsub.f32 %v710, %v1016
  %1018 = vmatmul.mubr.f32.gmra.mxu0 %v1017
  %v1019 = vpop.f32.mrf.mxu0
  %v1020 = vadd.f32 %v921, %v1019
  %v1021 = vpop.f32.mrf.mxu0
  %1022 = vmatprep.mubr.f32.mxu0 0.0
  %v1023 = vand.u32 %v713, 4294901760
  %v1024 = vsub.f32 %v713, %v1023
  %1025 = vmatmul.mubr.f32.gmra.mxu0 %v1024
  %v1026 = vpop.f32.mrf.mxu0
  %v1027 = vadd.f32 %v927, %v1026
  %v1028 = vpop.f32.mrf.mxu0
  %1029 = vmatprep.mubr.f32.mxu0 0.0
  %v1030 = vand.u32 %v716, 4294901760
  %v1031 = vsub.f32 %v716, %v1030
  %1032 = vmatmul.mubr.f32.gmra.mxu0 %v1031
  %v1033 = vpop.f32.mrf.mxu0
  %v1034 = vadd.f32 %v933, %v1033
  %v1035 = vpop.f32.mrf.mxu0
  %1036 = vdwg.mxu0
  %1037 = vmatprep.subr.mxu0 0.0
  %1038 = vmatpush1.msra.mxu0 0.0
  %1039 = vmatprep.subr.mxu0 0.0
  %1040 = vmatpush1.msra.mxu0 0.0
  %1041 = vmatprep.subr.mxu0 0.0
  %1042 = vmatpush1.msra.mxu0 0.0
  %1043 = vmatprep.subr.mxu0 0.0
  %1044 = vmatpush1.msra.mxu0 0.0
  %1045 = vmatprep.subr.mxu0 0.0
  %1046 = vmatpush1.msra.mxu0 0.0
  %1047 = vmatprep.subr.mxu0 0.0
  %1048 = vmatpush1.msra.mxu0 0.0
  %1049 = vmatprep.subr.mxu0 0.0
  %1050 = vmatpush1.msra.mxu0 0.0
  %1051 = vmatprep.subr.mxu0 0.0
  %1052 = vmatpush1.msra.mxu0 0.0
  %1053 = vmatprep.subr.mxu0 0.0
  %1054 = vmatpush1.msra.mxu0 0.0
  %1055 = vmatprep.subr.mxu0 0.0
  %1056 = vmatpush1.msra.mxu0 0.0
  %1057 = vmatprep.subr.mxu0 0.0
  %1058 = vmatpush1.msra.mxu0 0.0
  %1059 = vmatprep.subr.mxu0 0.0
  %1060 = vmatpush1.msra.mxu0 0.0
  %1061 = vmatprep.subr.mxu0 0.0
  %v1062 = vand.u32 %v676, 4294901760
  %1063 = vmatpush1.msra.mxu0 %v1062
  %1064 = vmatprep.subr.mxu0 0.0
  %v1065 = vand.u32 %v675, 4294901760
  %1066 = vmatpush1.msra.mxu0 %v1065
  %1067 = vmatprep.subr.mxu0 0.0
  %v1068 = vand.u32 %v674, 4294901760
  %1069 = vmatpush1.msra.mxu0 %v1068
  %1070 = vmatprep.subr.mxu0 0.0
  %v1071 = vand.u32 %v673, 4294901760
  %1072 = vmatpush1.msra.mxu0 %v1071
  %1073 = vmatprep.subr.mxu0 0.0
  %1074 = vmatpush2.msra.mxu0 0.0
  %1075 = vmatprep.subr.mxu0 0.0
  %1076 = vmatpush2.msra.mxu0 0.0
  %1077 = vmatprep.subr.mxu0 0.0
  %1078 = vmatpush2.msra.mxu0 0.0
  %1079 = vmatprep.subr.mxu0 0.0
  %1080 = vmatpush2.msra.mxu0 0.0
  %1081 = vmatprep.subr.mxu0 0.0
  %1082 = vmatpush2.msra.mxu0 0.0
  %1083 = vmatprep.subr.mxu0 0.0
  %1084 = vmatpush2.msra.mxu0 0.0
  %1085 = vmatprep.subr.mxu0 0.0
  %1086 = vmatpush2.msra.mxu0 0.0
  %1087 = vmatprep.subr.mxu0 0.0
  %1088 = vmatpush2.msra.mxu0 0.0
  %1089 = vmatprep.subr.mxu0 0.0
  %1090 = vmatpush2.msra.mxu0 0.0
  %1091 = vmatprep.subr.mxu0 0.0
  %1092 = vmatpush2.msra.mxu0 0.0
  %1093 = vmatprep.subr.mxu0 0.0
  %1094 = vmatpush2.msra.mxu0 0.0
  %1095 = vmatprep.subr.mxu0 0.0
  %1096 = vmatpush2.msra.mxu0 0.0
  %1097 = vmatprep.subr.mxu0 0.0
  %1098 = vmatpush2.msra.mxu0 0.0
  %1099 = vmatprep.subr.mxu0 0.0
  %1100 = vmatpush2.msra.mxu0 0.0
  %1101 = vmatprep.subr.mxu0 0.0
  %1102 = vmatpush2.msra.mxu0 0.0
  %1103 = vmatprep.subr.mxu0 0.0
  %1104 = vmatpush2.msra.mxu0 0.0
  %1105 = vmatprep.mubr.f32.mxu0 0.0
  %v1106 = vand.u32 %v707, 4294901760
  %v1107 = vsub.f32 %v707, %v1106
  %v1108 = vand.u32 %v1107, 4294901760
  %1109 = vmatmul.mubr.f32.gmra.mxu0 %v1108
  %v1110 = vpop.f32.mrf.mxu0
  %v1111 = vadd.f32 %v1013, %v1110
  %v1112 = vpop.f32.mrf.mxu0
  %1113 = vmatprep.mubr.f32.mxu0 0.0
  %v1114 = vand.u32 %v710, 4294901760
  %v1115 = vsub.f32 %v710, %v1114
  %v1116 = vand.u32 %v1115, 4294901760
  %1117 = vmatmul.mubr.f32.gmra.mxu0 %v1116
  %v1118 = vpop.f32.mrf.mxu0
  %v1119 = vadd.f32 %v1020, %v1118
  %v1120 = vpop.f32.mrf.mxu0
  %1121 = vmatprep.mubr.f32.mxu0 0.0
  %v1122 = vand.u32 %v713, 4294901760
  %v1123 = vsub.f32 %v713, %v1122
  %v1124 = vand.u32 %v1123, 4294901760
  %1125 = vmatmul.mubr.f32.gmra.mxu0 %v1124
  %v1126 = vpop.f32.mrf.mxu0
  %v1127 = vadd.f32 %v1027, %v1126
  %v1128 = vpop.f32.mrf.mxu0
  %1129 = vmatprep.mubr.f32.mxu0 0.0
  %v1130 = vand.u32 %v716, 4294901760
  %v1131 = vsub.f32 %v716, %v1130
  %v1132 = vand.u32 %v1131, 4294901760
  %1133 = vmatmul.mubr.f32.gmra.mxu0 %v1132
  %v1134 = vpop.f32.mrf.mxu0
  %v1135 = vadd.f32 %v1034, %v1134
  %v1136 = vpop.f32.mrf.mxu0
  %1137 = vdwg.mxu0
  %1138 = vmatprep.subr.mxu0 0.0
  %1139 = vmatpush1.msra.mxu0 0.0
  %1140 = vmatprep.subr.mxu0 0.0
  %1141 = vmatpush1.msra.mxu0 0.0
  %1142 = vmatprep.subr.mxu0 0.0
  %1143 = vmatpush1.msra.mxu0 0.0
  %1144 = vmatprep.subr.mxu0 0.0
  %1145 = vmatpush1.msra.mxu0 0.0
  %1146 = vmatprep.subr.mxu0 0.0
  %1147 = vmatpush1.msra.mxu0 0.0
  %1148 = vmatprep.subr.mxu0 0.0
  %1149 = vmatpush1.msra.mxu0 0.0
  %1150 = vmatprep.subr.mxu0 0.0
  %1151 = vmatpush1.msra.mxu0 0.0
  %1152 = vmatprep.subr.mxu0 0.0
  %1153 = vmatpush1.msra.mxu0 0.0
  %1154 = vmatprep.subr.mxu0 0.0
  %1155 = vmatpush1.msra.mxu0 0.0
  %1156 = vmatprep.subr.mxu0 0.0
  %1157 = vmatpush1.msra.mxu0 0.0
  %1158 = vmatprep.subr.mxu0 0.0
  %1159 = vmatpush1.msra.mxu0 0.0
  %1160 = vmatprep.subr.mxu0 0.0
  %1161 = vmatpush1.msra.mxu0 0.0
  %1162 = vmatprep.subr.mxu0 0.0
  %v1163 = vand.u32 %v676, 4294901760
  %v1164 = vsub.f32 %v676, %v1163
  %v1165 = vand.u32 %v1164, 4294901760
  %1166 = vmatpush1.msra.mxu0 %v1165
  %1167 = vmatprep.subr.mxu0 0.0
  %v1168 = vand.u32 %v675, 4294901760
  %v1169 = vsub.f32 %v675, %v1168
  %v1170 = vand.u32 %v1169, 4294901760
  %1171 = vmatpush1.msra.mxu0 %v1170
  %1172 = vmatprep.subr.mxu0 0.0
  %v1173 = vand.u32 %v674, 4294901760
  %v1174 = vsub.f32 %v674, %v1173
  %v1175 = vand.u32 %v1174, 4294901760
  %1176 = vmatpush1.msra.mxu0 %v1175
  %1177 = vmatprep.subr.mxu0 0.0
  %v1178 = vand.u32 %v673, 4294901760
  %v1179 = vsub.f32 %v673, %v1178
  %v1180 = vand.u32 %v1179, 4294901760
  %1181 = vmatpush1.msra.mxu0 %v1180
  %1182 = vmatprep.subr.mxu0 0.0
  %1183 = vmatpush2.msra.mxu0 0.0
  %1184 = vmatprep.subr.mxu0 0.0
  %1185 = vmatpush2.msra.mxu0 0.0
  %1186 = vmatprep.subr.mxu0 0.0
  %1187 = vmatpush2.msra.mxu0 0.0
  %1188 = vmatprep.subr.mxu0 0.0
  %1189 = vmatpush2.msra.mxu0 0.0
  %1190 = vmatprep.subr.mxu0 0.0
  %1191 = vmatpush2.msra.mxu0 0.0
  %1192 = vmatprep.subr.mxu0 0.0
  %1193 = vmatpush2.msra.mxu0 0.0
  %1194 = vmatprep.subr.mxu0 0.0
  %1195 = vmatpush2.msra.mxu0 0.0
  %1196 = vmatprep.subr.mxu0 0.0
  %1197 = vmatpush2.msra.mxu0 0.0
  %1198 = vmatprep.subr.mxu0 0.0
  %1199 = vmatpush2.msra.mxu0 0.0
  %1200 = vmatprep.subr.mxu0 0.0
  %1201 = vmatpush2.msra.mxu0 0.0
  %1202 = vmatprep.subr.mxu0 0.0
  %1203 = vmatpush2.msra.mxu0 0.0
  %1204 = vmatprep.subr.mxu0 0.0
  %1205 = vmatpush2.msra.mxu0 0.0
  %1206 = vmatprep.subr.mxu0 0.0
  %1207 = vmatpush2.msra.mxu0 0.0
  %1208 = vmatprep.subr.mxu0 0.0
  %1209 = vmatpush2.msra.mxu0 0.0
  %1210 = vmatprep.subr.mxu0 0.0
  %1211 = vmatpush2.msra.mxu0 0.0
  %1212 = vmatprep.subr.mxu0 0.0
  %1213 = vmatpush2.msra.mxu0 0.0
  %1214 = vmatprep.mubr.f32.mxu0 0.0
  %v1215 = vand.u32 %v707, 4294901760
  %1216 = vmatmul.mubr.f32.gmra.mxu0 %v1215
  %v1217 = vpop.f32.mrf.mxu0
  %v1218 = vadd.f32 %v1111, %v1217
  %v1219 = vpop.f32.mrf.mxu0
  %1220 = vmatprep.mubr.f32.mxu0 0.0
  %v1221 = vand.u32 %v710, 4294901760
  %1222 = vmatmul.mubr.f32.gmra.mxu0 %v1221
  %v1223 = vpop.f32.mrf.mxu0
  %v1224 = vadd.f32 %v1119, %v1223
  %v1225 = vpop.f32.mrf.mxu0
  %1226 = vmatprep.mubr.f32.mxu0 0.0
  %v1227 = vand.u32 %v713, 4294901760
  %1228 = vmatmul.mubr.f32.gmra.mxu0 %v1227
  %v1229 = vpop.f32.mrf.mxu0
  %v1230 = vadd.f32 %v1127, %v1229
  %v1231 = vpop.f32.mrf.mxu0
  %1232 = vmatprep.mubr.f32.mxu0 0.0
  %v1233 = vand.u32 %v716, 4294901760
  %1234 = vmatmul.mubr.f32.gmra.mxu0 %v1233
  %v1235 = vpop.f32.mrf.mxu0
  %v1236 = vadd.f32 %v1135, %v1235
  %v1237 = vpop.f32.mrf.mxu0
  %1238 = vdwg.mxu0
  %1239 = vmatprep.subr.mxu0 0.0
  %1240 = vmatpush1.msra.mxu0 0.0
  %1241 = vmatprep.subr.mxu0 0.0
  %1242 = vmatpush1.msra.mxu0 0.0
  %1243 = vmatprep.subr.mxu0 0.0
  %1244 = vmatpush1.msra.mxu0 0.0
  %1245 = vmatprep.subr.mxu0 0.0
  %1246 = vmatpush1.msra.mxu0 0.0
  %1247 = vmatprep.subr.mxu0 0.0
  %1248 = vmatpush1.msra.mxu0 0.0
  %1249 = vmatprep.subr.mxu0 0.0
  %1250 = vmatpush1.msra.mxu0 0.0
  %1251 = vmatprep.subr.mxu0 0.0
  %1252 = vmatpush1.msra.mxu0 0.0
  %1253 = vmatprep.subr.mxu0 0.0
  %1254 = vmatpush1.msra.mxu0 0.0
  %1255 = vmatprep.subr.mxu0 0.0
  %1256 = vmatpush1.msra.mxu0 0.0
  %1257 = vmatprep.subr.mxu0 0.0
  %1258 = vmatpush1.msra.mxu0 0.0
  %1259 = vmatprep.subr.mxu0 0.0
  %1260 = vmatpush1.msra.mxu0 0.0
  %1261 = vmatprep.subr.mxu0 0.0
  %1262 = vmatpush1.msra.mxu0 0.0
  %1263 = vmatprep.subr.mxu0 0.0
  %v1264 = vand.u32 %v676, 4294901760
  %1265 = vmatpush1.msra.mxu0 %v1264
  %1266 = vmatprep.subr.mxu0 0.0
  %v1267 = vand.u32 %v675, 4294901760
  %1268 = vmatpush1.msra.mxu0 %v1267
  %1269 = vmatprep.subr.mxu0 0.0
  %v1270 = vand.u32 %v674, 4294901760
  %1271 = vmatpush1.msra.mxu0 %v1270
  %1272 = vmatprep.subr.mxu0 0.0
  %v1273 = vand.u32 %v673, 4294901760
  %1274 = vmatpush1.msra.mxu0 %v1273
  %1275 = vmatprep.subr.mxu0 0.0
  %1276 = vmatpush2.msra.mxu0 0.0
  %1277 = vmatprep.subr.mxu0 0.0
  %1278 = vmatpush2.msra.mxu0 0.0
  %1279 = vmatprep.subr.mxu0 0.0
  %1280 = vmatpush2.msra.mxu0 0.0
  %1281 = vmatprep.subr.mxu0 0.0
  %1282 = vmatpush2.msra.mxu0 0.0
  %1283 = vmatprep.subr.mxu0 0.0
  %1284 = vmatpush2.msra.mxu0 0.0
  %1285 = vmatprep.subr.mxu0 0.0
  %1286 = vmatpush2.msra.mxu0 0.0
  %1287 = vmatprep.subr.mxu0 0.0
  %1288 = vmatpush2.msra.mxu0 0.0
  %1289 = vmatprep.subr.mxu0 0.0
  %1290 = vmatpush2.msra.mxu0 0.0
  %1291 = vmatprep.subr.mxu0 0.0
  %1292 = vmatpush2.msra.mxu0 0.0
  %1293 = vmatprep.subr.mxu0 0.0
  %1294 = vmatpush2.msra.mxu0 0.0
  %1295 = vmatprep.subr.mxu0 0.0
  %1296 = vmatpush2.msra.mxu0 0.0
  %1297 = vmatprep.subr.mxu0 0.0
  %1298 = vmatpush2.msra.mxu0 0.0
  %1299 = vmatprep.subr.mxu0 0.0
  %1300 = vmatpush2.msra.mxu0 0.0
  %1301 = vmatprep.subr.mxu0 0.0
  %1302 = vmatpush2.msra.mxu0 0.0
  %1303 = vmatprep.subr.mxu0 0.0
  %1304 = vmatpush2.msra.mxu0 0.0
  %1305 = vmatprep.subr.mxu0 0.0
  %1306 = vmatpush2.msra.mxu0 0.0
  %1307 = vmatprep.mubr.f32.mxu0 0.0
  %v1308 = vand.u32 %v707, 4294901760
  %1309 = vmatmul.mubr.f32.gmra.mxu0 %v1308
  %v1310 = vpop.f32.mrf.mxu0
  %v1311 = vadd.f32 %v1218, %v1310
  %v1312 = vpop.f32.mrf.mxu0
  %1313 = vmatprep.mubr.f32.mxu0 0.0
  %v1314 = vand.u32 %v710, 4294901760
  %1315 = vmatmul.mubr.f32.gmra.mxu0 %v1314
  %v1316 = vpop.f32.mrf.mxu0
  %v1317 = vadd.f32 %v1224, %v1316
  %v1318 = vpop.f32.mrf.mxu0
  %1319 = vmatprep.mubr.f32.mxu0 0.0
  %v1320 = vand.u32 %v713, 4294901760
  %1321 = vmatmul.mubr.f32.gmra.mxu0 %v1320
  %v1322 = vpop.f32.mrf.mxu0
  %v1323 = vadd.f32 %v1230, %v1322
  %v1324 = vpop.f32.mrf.mxu0
  %1325 = vmatprep.mubr.f32.mxu0 0.0
  %v1326 = vand.u32 %v716, 4294901760
  %1327 = vmatmul.mubr.f32.gmra.mxu0 %v1326
  %v1328 = vpop.f32.mrf.mxu0
  %v1329 = vadd.f32 %v1236, %v1328
  %v1330 = vpop.f32.mrf.mxu0
  %1331 = vdwg.mxu0
  %v1332 = vmin.f32 %v1311, 0.0
  %v1333 = vmin.f32 %v1317, 0.0
  %v1334 = vmin.f32 %v1323, 0.0
  %v1335 = vmin.f32 %v1329, 0.0
  %v1336 = vmul.f32 %v1332, 1.442695
  %v1337 = vpow.pop %v1336
  %v1338 = vmul.f32 %v1333, 1.442695
  %v1339 = vpow.pop %v1338
  %v1340 = vmul.f32 %v1334, 1.442695
  %v1341 = vpow.pop %v1340
  %v1342 = vmul.f32 %v1335, 1.442695
  %v1343 = vpow.pop %v1342
  %v1344 = vsub.f32 %v1337, 1.0
  %v1345 = vsub.f32 %v1339, 1.0
  %v1346 = vsub.f32 %v1341, 1.0
  %v1347 = vsub.f32 %v1343, 1.0
  %v1348 = vmul.f32 %v1344, 1.6732632
  %v1349 = vmul.f32 %v1345, 1.6732632
  %v1350 = vmul.f32 %v1346, 1.6732632
  %v1351 = vmul.f32 %v1347, 1.6732632
  %vm1352 = vcmp.gt.f32.partialorder %v1311, 0.0
  %vm1353 = vcmp.gt.f32.partialorder %v1317, 0.0
  %vm1354 = vcmp.gt.f32.partialorder %v1323, 0.0
  %vm1355 = vcmp.gt.f32.partialorder %v1329, 0.0
  %v1356 = vsel %vm1352, %v1311, %v1348
  %v1357 = vsel %vm1353, %v1317, %v1349
  %v1358 = vsel %vm1354, %v1323, %v1350
  %v1359 = vsel %vm1355, %v1329, %v1351
  %v1360 = vld [vmem:[%s5] sm:$0x1]
  %v1361 = vld [vmem:[#allocation2] sm:$0x1]
  %1363 = vset.pattern.permute.xlu0 0
  %1364 = vperm.xlu0 %1363, %v1361
  %v1365 = vpop.permute.xlu0 %1364
  %v1367 = vlaneseq
  %v1368 = vshrl.u32 %v1367, 7
  %v1369 = vsub.s32 0, %v1368
  %v1370 = vrot.slane %v1365, %v1369
  %v1372 = vsel %vm705, %v1360, 0
  %1374 = vmatprep.subr.mxu0 0.0
  %1375 = vmatpush1.msra.mxu0 0.0
  %1376 = vmatprep.subr.mxu0 0.0
  %1377 = vmatpush1.msra.mxu0 0.0
  %1378 = vmatprep.subr.mxu0 0.0
  %1379 = vmatpush1.msra.mxu0 0.0
  %1380 = vmatprep.subr.mxu0 0.0
  %1381 = vmatpush1.msra.mxu0 0.0
  %1382 = vmatprep.subr.mxu0 0.0
  %1383 = vmatpush1.msra.mxu0 0.0
  %1384 = vmatprep.subr.mxu0 0.0
  %1385 = vmatpush1.msra.mxu0 0.0
  %1386 = vmatprep.subr.mxu0 0.0
  %1387 = vmatpush1.msra.mxu0 0.0
  %1388 = vmatprep.subr.mxu0 0.0
  %1389 = vmatpush1.msra.mxu0 0.0
  %1390 = vmatprep.subr.mxu0 0.0
  %1391 = vmatpush1.msra.mxu0 0.0
  %1392 = vmatprep.subr.mxu0 0.0
  %1393 = vmatpush1.msra.mxu0 0.0
  %1394 = vmatprep.subr.mxu0 0.0
  %1395 = vmatpush1.msra.mxu0 0.0
  %1396 = vmatprep.subr.mxu0 0.0
  %1397 = vmatpush1.msra.mxu0 0.0
  %1398 = vmatprep.subr.mxu0 0.0
  %v1399 = vand.u32 %v1359, 4294901760
  %1400 = vmatpush1.msra.mxu0 %v1399
  %1401 = vmatprep.subr.mxu0 0.0
  %v1402 = vand.u32 %v1358, 4294901760
  %1403 = vmatpush1.msra.mxu0 %v1402
  %1404 = vmatprep.subr.mxu0 0.0
  %v1405 = vand.u32 %v1357, 4294901760
  %1406 = vmatpush1.msra.mxu0 %v1405
  %1407 = vmatprep.subr.mxu0 0.0
  %v1408 = vand.u32 %v1356, 4294901760
  %1409 = vmatpush1.msra.mxu0 %v1408
  %1410 = vmatprep.subr.mxu0 0.0
  %1411 = vmatpush2.msra.mxu0 0.0
  %1412 = vmatprep.subr.mxu0 0.0
  %1413 = vmatpush2.msra.mxu0 0.0
  %1414 = vmatprep.subr.mxu0 0.0
  %1415 = vmatpush2.msra.mxu0 0.0
  %1416 = vmatprep.subr.mxu0 0.0
  %1417 = vmatpush2.msra.mxu0 0.0
  %1418 = vmatprep.subr.mxu0 0.0
  %1419 = vmatpush2.msra.mxu0 0.0
  %1420 = vmatprep.subr.mxu0 0.0
  %1421 = vmatpush2.msra.mxu0 0.0
  %1422 = vmatprep.subr.mxu0 0.0
  %1423 = vmatpush2.msra.mxu0 0.0
  %1424 = vmatprep.subr.mxu0 0.0
  %1425 = vmatpush2.msra.mxu0 0.0
  %1426 = vmatprep.subr.mxu0 0.0
  %1427 = vmatpush2.msra.mxu0 0.0
  %1428 = vmatprep.subr.mxu0 0.0
  %1429 = vmatpush2.msra.mxu0 0.0
  %1430 = vmatprep.subr.mxu0 0.0
  %1431 = vmatpush2.msra.mxu0 0.0
  %1432 = vmatprep.subr.mxu0 0.0
  %1433 = vmatpush2.msra.mxu0 0.0
  %1434 = vmatprep.subr.mxu0 0.0
  %1435 = vmatpush2.msra.mxu0 0.0
  %1436 = vmatprep.subr.mxu0 0.0
  %1437 = vmatpush2.msra.mxu0 0.0
  %1438 = vmatprep.subr.mxu0 0.0
  %1439 = vmatpush2.msra.mxu0 0.0
  %1440 = vmatprep.subr.mxu0 0.0
  %1441 = vmatpush2.msra.mxu0 0.0
  %1442 = vmatprep.mubr.f32.mxu0 0.0
  %v1443 = vand.u32 %v1372, 4294901760
  %v1444 = vsub.f32 %v1372, %v1443
  %v1445 = vand.u32 %v1444, 4294901760
  %v1446 = vsub.f32 %v1444, %v1445
  %v1447 = vand.u32 %v1446, 4294901760
  %1448 = vmatmul.mubr.f32.gmra.mxu0 %v1447
  %v1449 = vpop.f32.mrf.mxu0
  %v1450 = vadd.f32 %v1370, %v1449
  %v1451 = vpop.f32.mrf.mxu0
  %1452 = vdwg.mxu0
  %1453 = vmatprep.subr.mxu0 0.0
  %1454 = vmatpush1.msra.mxu0 0.0
  %1455 = vmatprep.subr.mxu0 0.0
  %1456 = vmatpush1.msra.mxu0 0.0
  %1457 = vmatprep.subr.mxu0 0.0
  %1458 = vmatpush1.msra.mxu0 0.0
  %1459 = vmatprep.subr.mxu0 0.0
  %1460 = vmatpush1.msra.mxu0 0.0
  %1461 = vmatprep.subr.mxu0 0.0
  %1462 = vmatpush1.msra.mxu0 0.0
  %1463 = vmatprep.subr.mxu0 0.0
  %1464 = vmatpush1.msra.mxu0 0.0
  %1465 = vmatprep.subr.mxu0 0.0
  %1466 = vmatpush1.msra.mxu0 0.0
  %1467 = vmatprep.subr.mxu0 0.0
  %1468 = vmatpush1.msra.mxu0 0.0
  %1469 = vmatprep.subr.mxu0 0.0
  %1470 = vmatpush1.msra.mxu0 0.0
  %1471 = vmatprep.subr.mxu0 0.0
  %1472 = vmatpush1.msra.mxu0 0.0
  %1473 = vmatprep.subr.mxu0 0.0
  %1474 = vmatpush1.msra.mxu0 0.0
  %1475 = vmatprep.subr.mxu0 0.0
  %1476 = vmatpush1.msra.mxu0 0.0
  %1477 = vmatprep.subr.mxu0 0.0
  %v1478 = vand.u32 %v1359, 4294901760
  %v1479 = vsub.f32 %v1359, %v1478
  %v1480 = vand.u32 %v1479, 4294901760
  %v1481 = vsub.f32 %v1479, %v1480
  %v1482 = vand.u32 %v1481, 4294901760
  %1483 = vmatpush1.msra.mxu0 %v1482
  %1484 = vmatprep.subr.mxu0 0.0
  %v1485 = vand.u32 %v1358, 4294901760
  %v1486 = vsub.f32 %v1358, %v1485
  %v1487 = vand.u32 %v1486, 4294901760
  %v1488 = vsub.f32 %v1486, %v1487
  %v1489 = vand.u32 %v1488, 4294901760
  %1490 = vmatpush1.msra.mxu0 %v1489
  %1491 = vmatprep.subr.mxu0 0.0
  %v1492 = vand.u32 %v1357, 4294901760
  %v1493 = vsub.f32 %v1357, %v1492
  %v1494 = vand.u32 %v1493, 4294901760
  %v1495 = vsub.f32 %v1493, %v1494
  %v1496 = vand.u32 %v1495, 4294901760
  %1497 = vmatpush1.msra.mxu0 %v1496
  %1498 = vmatprep.subr.mxu0 0.0
  %v1499 = vand.u32 %v1356, 4294901760
  %v1500 = vsub.f32 %v1356, %v1499
  %v1501 = vand.u32 %v1500, 4294901760
  %v1502 = vsub.f32 %v1500, %v1501
  %v1503 = vand.u32 %v1502, 4294901760
  %1504 = vmatpush1.msra.mxu0 %v1503
  %1505 = vmatprep.subr.mxu0 0.0
  %1506 = vmatpush2.msra.mxu0 0.0
  %1507 = vmatprep.subr.mxu0 0.0
  %1508 = vmatpush2.msra.mxu0 0.0
  %1509 = vmatprep.subr.mxu0 0.0
  %1510 = vmatpush2.msra.mxu0 0.0
  %1511 = vmatprep.subr.mxu0 0.0
  %1512 = vmatpush2.msra.mxu0 0.0
  %1513 = vmatprep.subr.mxu0 0.0
  %1514 = vmatpush2.msra.mxu0 0.0
  %1515 = vmatprep.subr.mxu0 0.0
  %1516 = vmatpush2.msra.mxu0 0.0
  %1517 = vmatprep.subr.mxu0 0.0
  %1518 = vmatpush2.msra.mxu0 0.0
  %1519 = vmatprep.subr.mxu0 0.0
  %1520 = vmatpush2.msra.mxu0 0.0
  %1521 = vmatprep.subr.mxu0 0.0
  %1522 = vmatpush2.msra.mxu0 0.0
  %1523 = vmatprep.subr.mxu0 0.0
  %1524 = vmatpush2.msra.mxu0 0.0
  %1525 = vmatprep.subr.mxu0 0.0
  %1526 = vmatpush2.msra.mxu0 0.0
  %1527 = vmatprep.subr.mxu0 0.0
  %1528 = vmatpush2.msra.mxu0 0.0
  %1529 = vmatprep.subr.mxu0 0.0
  %1530 = vmatpush2.msra.mxu0 0.0
  %1531 = vmatprep.subr.mxu0 0.0
  %1532 = vmatpush2.msra.mxu0 0.0
  %1533 = vmatprep.subr.mxu0 0.0
  %1534 = vmatpush2.msra.mxu0 0.0
  %1535 = vmatprep.subr.mxu0 0.0
  %1536 = vmatpush2.msra.mxu0 0.0
  %1537 = vmatprep.mubr.f32.mxu0 0.0
  %v1538 = vand.u32 %v1372, 4294901760
  %1539 = vmatmul.mubr.f32.gmra.mxu0 %v1538
  %v1540 = vpop.f32.mrf.mxu0
  %v1541 = vadd.f32 %v1450, %v1540
  %v1542 = vpop.f32.mrf.mxu0
  %1543 = vdwg.mxu0
  %1544 = vmatprep.subr.mxu0 0.0
  %1545 = vmatpush1.msra.mxu0 0.0
  %1546 = vmatprep.subr.mxu0 0.0
  %1547 = vmatpush1.msra.mxu0 0.0
  %1548 = vmatprep.subr.mxu0 0.0
  %1549 = vmatpush1.msra.mxu0 0.0
  %1550 = vmatprep.subr.mxu0 0.0
  %1551 = vmatpush1.msra.mxu0 0.0
  %1552 = vmatprep.subr.mxu0 0.0
  %1553 = vmatpush1.msra.mxu0 0.0
  %1554 = vmatprep.subr.mxu0 0.0
  %1555 = vmatpush1.msra.mxu0 0.0
  %1556 = vmatprep.subr.mxu0 0.0
  %1557 = vmatpush1.msra.mxu0 0.0
  %1558 = vmatprep.subr.mxu0 0.0
  %1559 = vmatpush1.msra.mxu0 0.0
  %1560 = vmatprep.subr.mxu0 0.0
  %1561 = vmatpush1.msra.mxu0 0.0
  %1562 = vmatprep.subr.mxu0 0.0
  %1563 = vmatpush1.msra.mxu0 0.0
  %1564 = vmatprep.subr.mxu0 0.0
  %1565 = vmatpush1.msra.mxu0 0.0
  %1566 = vmatprep.subr.mxu0 0.0
  %1567 = vmatpush1.msra.mxu0 0.0
  %1568 = vmatprep.subr.mxu0 0.0
  %v1569 = vand.u32 %v1359, 4294901760
  %v1570 = vsub.f32 %v1359, %v1569
  %1571 = vmatpush1.msra.mxu0 %v1570
  %1572 = vmatprep.subr.mxu0 0.0
  %v1573 = vand.u32 %v1358, 4294901760
  %v1574 = vsub.f32 %v1358, %v1573
  %1575 = vmatpush1.msra.mxu0 %v1574
  %1576 = vmatprep.subr.mxu0 0.0
  %v1577 = vand.u32 %v1357, 4294901760
  %v1578 = vsub.f32 %v1357, %v1577
  %1579 = vmatpush1.msra.mxu0 %v1578
  %1580 = vmatprep.subr.mxu0 0.0
  %v1581 = vand.u32 %v1356, 4294901760
  %v1582 = vsub.f32 %v1356, %v1581
  %1583 = vmatpush1.msra.mxu0 %v1582
  %1584 = vmatprep.subr.mxu0 0.0
  %1585 = vmatpush2.msra.mxu0 0.0
  %1586 = vmatprep.subr.mxu0 0.0
  %1587 = vmatpush2.msra.mxu0 0.0
  %1588 = vmatprep.subr.mxu0 0.0
  %1589 = vmatpush2.msra.mxu0 0.0
  %1590 = vmatprep.subr.mxu0 0.0
  %1591 = vmatpush2.msra.mxu0 0.0
  %1592 = vmatprep.subr.mxu0 0.0
  %1593 = vmatpush2.msra.mxu0 0.0
  %1594 = vmatprep.subr.mxu0 0.0
  %1595 = vmatpush2.msra.mxu0 0.0
  %1596 = vmatprep.subr.mxu0 0.0
  %1597 = vmatpush2.msra.mxu0 0.0
  %1598 = vmatprep.subr.mxu0 0.0
  %1599 = vmatpush2.msra.mxu0 0.0
  %1600 = vmatprep.subr.mxu0 0.0
  %1601 = vmatpush2.msra.mxu0 0.0
  %1602 = vmatprep.subr.mxu0 0.0
  %1603 = vmatpush2.msra.mxu0 0.0
  %1604 = vmatprep.subr.mxu0 0.0
  %1605 = vmatpush2.msra.mxu0 0.0
  %1606 = vmatprep.subr.mxu0 0.0
  %1607 = vmatpush2.msra.mxu0 0.0
  %1608 = vmatprep.subr.mxu0 0.0
  %1609 = vmatpush2.msra.mxu0 0.0
  %1610 = vmatprep.subr.mxu0 0.0
  %1611 = vmatpush2.msra.mxu0 0.0
  %1612 = vmatprep.subr.mxu0 0.0
  %1613 = vmatpush2.msra.mxu0 0.0
  %1614 = vmatprep.subr.mxu0 0.0
  %1615 = vmatpush2.msra.mxu0 0.0
  %1616 = vmatprep.mubr.f32.mxu0 0.0
  %v1617 = vand.u32 %v1372, 4294901760
  %v1618 = vsub.f32 %v1372, %v1617
  %1619 = vmatmul.mubr.f32.gmra.mxu0 %v1618
  %v1620 = vpop.f32.mrf.mxu0
  %v1621 = vadd.f32 %v1541, %v1620
  %v1622 = vpop.f32.mrf.mxu0
  %1623 = vdwg.mxu0
  %1624 = vmatprep.subr.mxu0 0.0
  %1625 = vmatpush1.msra.mxu0 0.0
  %1626 = vmatprep.subr.mxu0 0.0
  %1627 = vmatpush1.msra.mxu0 0.0
  %1628 = vmatprep.subr.mxu0 0.0
  %1629 = vmatpush1.msra.mxu0 0.0
  %1630 = vmatprep.subr.mxu0 0.0
  %1631 = vmatpush1.msra.mxu0 0.0
  %1632 = vmatprep.subr.mxu0 0.0
  %1633 = vmatpush1.msra.mxu0 0.0
  %1634 = vmatprep.subr.mxu0 0.0
  %1635 = vmatpush1.msra.mxu0 0.0
  %1636 = vmatprep.subr.mxu0 0.0
  %1637 = vmatpush1.msra.mxu0 0.0
  %1638 = vmatprep.subr.mxu0 0.0
  %1639 = vmatpush1.msra.mxu0 0.0
  %1640 = vmatprep.subr.mxu0 0.0
  %1641 = vmatpush1.msra.mxu0 0.0
  %1642 = vmatprep.subr.mxu0 0.0
  %1643 = vmatpush1.msra.mxu0 0.0
  %1644 = vmatprep.subr.mxu0 0.0
  %1645 = vmatpush1.msra.mxu0 0.0
  %1646 = vmatprep.subr.mxu0 0.0
  %1647 = vmatpush1.msra.mxu0 0.0
  %1648 = vmatprep.subr.mxu0 0.0
  %v1649 = vand.u32 %v1359, 4294901760
  %1650 = vmatpush1.msra.mxu0 %v1649
  %1651 = vmatprep.subr.mxu0 0.0
  %v1652 = vand.u32 %v1358, 4294901760
  %1653 = vmatpush1.msra.mxu0 %v1652
  %1654 = vmatprep.subr.mxu0 0.0
  %v1655 = vand.u32 %v1357, 4294901760
  %1656 = vmatpush1.msra.mxu0 %v1655
  %1657 = vmatprep.subr.mxu0 0.0
  %v1658 = vand.u32 %v1356, 4294901760
  %1659 = vmatpush1.msra.mxu0 %v1658
  %1660 = vmatprep.subr.mxu0 0.0
  %1661 = vmatpush2.msra.mxu0 0.0
  %1662 = vmatprep.subr.mxu0 0.0
  %1663 = vmatpush2.msra.mxu0 0.0
  %1664 = vmatprep.subr.mxu0 0.0
  %1665 = vmatpush2.msra.mxu0 0.0
  %1666 = vmatprep.subr.mxu0 0.0
  %1667 = vmatpush2.msra.mxu0 0.0
  %1668 = vmatprep.subr.mxu0 0.0
  %1669 = vmatpush2.msra.mxu0 0.0
  %1670 = vmatprep.subr.mxu0 0.0
  %1671 = vmatpush2.msra.mxu0 0.0
  %1672 = vmatprep.subr.mxu0 0.0
  %1673 = vmatpush2.msra.mxu0 0.0
  %1674 = vmatprep.subr.mxu0 0.0
  %1675 = vmatpush2.msra.mxu0 0.0
  %1676 = vmatprep.subr.mxu0 0.0
  %1677 = vmatpush2.msra.mxu0 0.0
  %1678 = vmatprep.subr.mxu0 0.0
  %1679 = vmatpush2.msra.mxu0 0.0
  %1680 = vmatprep.subr.mxu0 0.0
  %1681 = vmatpush2.msra.mxu0 0.0
  %1682 = vmatprep.subr.mxu0 0.0
  %1683 = vmatpush2.msra.mxu0 0.0
  %1684 = vmatprep.subr.mxu0 0.0
  %1685 = vmatpush2.msra.mxu0 0.0
  %1686 = vmatprep.subr.mxu0 0.0
  %1687 = vmatpush2.msra.mxu0 0.0
  %1688 = vmatprep.subr.mxu0 0.0
  %1689 = vmatpush2.msra.mxu0 0.0
  %1690 = vmatprep.subr.mxu0 0.0
  %1691 = vmatpush2.msra.mxu0 0.0
  %1692 = vmatprep.mubr.f32.mxu0 0.0
  %v1693 = vand.u32 %v1372, 4294901760
  %v1694 = vsub.f32 %v1372, %v1693
  %v1695 = vand.u32 %v1694, 4294901760
  %1696 = vmatmul.mubr.f32.gmra.mxu0 %v1695
  %v1697 = vpop.f32.mrf.mxu0
  %v1698 = vadd.f32 %v1621, %v1697
  %v1699 = vpop.f32.mrf.mxu0
  %1700 = vdwg.mxu0
  %1701 = vmatprep.subr.mxu0 0.0
  %1702 = vmatpush1.msra.mxu0 0.0
  %1703 = vmatprep.subr.mxu0 0.0
  %1704 = vmatpush1.msra.mxu0 0.0
  %1705 = vmatprep.subr.mxu0 0.0
  %1706 = vmatpush1.msra.mxu0 0.0
  %1707 = vmatprep.subr.mxu0 0.0
  %1708 = vmatpush1.msra.mxu0 0.0
  %1709 = vmatprep.subr.mxu0 0.0
  %1710 = vmatpush1.msra.mxu0 0.0
  %1711 = vmatprep.subr.mxu0 0.0
  %1712 = vmatpush1.msra.mxu0 0.0
  %1713 = vmatprep.subr.mxu0 0.0
  %1714 = vmatpush1.msra.mxu0 0.0
  %1715 = vmatprep.subr.mxu0 0.0
  %1716 = vmatpush1.msra.mxu0 0.0
  %1717 = vmatprep.subr.mxu0 0.0
  %1718 = vmatpush1.msra.mxu0 0.0
  %1719 = vmatprep.subr.mxu0 0.0
  %1720 = vmatpush1.msra.mxu0 0.0
  %1721 = vmatprep.subr.mxu0 0.0
  %1722 = vmatpush1.msra.mxu0 0.0
  %1723 = vmatprep.subr.mxu0 0.0
  %1724 = vmatpush1.msra.mxu0 0.0
  %1725 = vmatprep.subr.mxu0 0.0
  %v1726 = vand.u32 %v1359, 4294901760
  %v1727 = vsub.f32 %v1359, %v1726
  %v1728 = vand.u32 %v1727, 4294901760
  %1729 = vmatpush1.msra.mxu0 %v1728
  %1730 = vmatprep.subr.mxu0 0.0
  %v1731 = vand.u32 %v1358, 4294901760
  %v1732 = vsub.f32 %v1358, %v1731
  %v1733 = vand.u32 %v1732, 4294901760
  %1734 = vmatpush1.msra.mxu0 %v1733
  %1735 = vmatprep.subr.mxu0 0.0
  %v1736 = vand.u32 %v1357, 4294901760
  %v1737 = vsub.f32 %v1357, %v1736
  %v1738 = vand.u32 %v1737, 4294901760
  %1739 = vmatpush1.msra.mxu0 %v1738
  %1740 = vmatprep.subr.mxu0 0.0
  %v1741 = vand.u32 %v1356, 4294901760
  %v1742 = vsub.f32 %v1356, %v1741
  %v1743 = vand.u32 %v1742, 4294901760
  %1744 = vmatpush1.msra.mxu0 %v1743
  %1745 = vmatprep.subr.mxu0 0.0
  %1746 = vmatpush2.msra.mxu0 0.0
  %1747 = vmatprep.subr.mxu0 0.0
  %1748 = vmatpush2.msra.mxu0 0.0
  %1749 = vmatprep.subr.mxu0 0.0
  %1750 = vmatpush2.msra.mxu0 0.0
  %1751 = vmatprep.subr.mxu0 0.0
  %1752 = vmatpush2.msra.mxu0 0.0
  %1753 = vmatprep.subr.mxu0 0.0
  %1754 = vmatpush2.msra.mxu0 0.0
  %1755 = vmatprep.subr.mxu0 0.0
  %1756 = vmatpush2.msra.mxu0 0.0
  %1757 = vmatprep.subr.mxu0 0.0
  %1758 = vmatpush2.msra.mxu0 0.0
  %1759 = vmatprep.subr.mxu0 0.0
  %1760 = vmatpush2.msra.mxu0 0.0
  %1761 = vmatprep.subr.mxu0 0.0
  %1762 = vmatpush2.msra.mxu0 0.0
  %1763 = vmatprep.subr.mxu0 0.0
  %1764 = vmatpush2.msra.mxu0 0.0
  %1765 = vmatprep.subr.mxu0 0.0
  %1766 = vmatpush2.msra.mxu0 0.0
  %1767 = vmatprep.subr.mxu0 0.0
  %1768 = vmatpush2.msra.mxu0 0.0
  %1769 = vmatprep.subr.mxu0 0.0
  %1770 = vmatpush2.msra.mxu0 0.0
  %1771 = vmatprep.subr.mxu0 0.0
  %1772 = vmatpush2.msra.mxu0 0.0
  %1773 = vmatprep.subr.mxu0 0.0
  %1774 = vmatpush2.msra.mxu0 0.0
  %1775 = vmatprep.subr.mxu0 0.0
  %1776 = vmatpush2.msra.mxu0 0.0
  %1777 = vmatprep.mubr.f32.mxu0 0.0
  %v1778 = vand.u32 %v1372, 4294901760
  %1779 = vmatmul.mubr.f32.gmra.mxu0 %v1778
  %v1780 = vpop.f32.mrf.mxu0
  %v1781 = vadd.f32 %v1698, %v1780
  %v1782 = vpop.f32.mrf.mxu0
  %1783 = vdwg.mxu0
  %1784 = vmatprep.subr.mxu0 0.0
  %1785 = vmatpush1.msra.mxu0 0.0
  %1786 = vmatprep.subr.mxu0 0.0
  %1787 = vmatpush1.msra.mxu0 0.0
  %1788 = vmatprep.subr.mxu0 0.0
  %1789 = vmatpush1.msra.mxu0 0.0
  %1790 = vmatprep.subr.mxu0 0.0
  %1791 = vmatpush1.msra.mxu0 0.0
  %1792 = vmatprep.subr.mxu0 0.0
  %1793 = vmatpush1.msra.mxu0 0.0
  %1794 = vmatprep.subr.mxu0 0.0
  %1795 = vmatpush1.msra.mxu0 0.0
  %1796 = vmatprep.subr.mxu0 0.0
  %1797 = vmatpush1.msra.mxu0 0.0
  %1798 = vmatprep.subr.mxu0 0.0
  %1799 = vmatpush1.msra.mxu0 0.0
  %1800 = vmatprep.subr.mxu0 0.0
  %1801 = vmatpush1.msra.mxu0 0.0
  %1802 = vmatprep.subr.mxu0 0.0
  %1803 = vmatpush1.msra.mxu0 0.0
  %1804 = vmatprep.subr.mxu0 0.0
  %1805 = vmatpush1.msra.mxu0 0.0
  %1806 = vmatprep.subr.mxu0 0.0
  %1807 = vmatpush1.msra.mxu0 0.0
  %1808 = vmatprep.subr.mxu0 0.0
  %v1809 = vand.u32 %v1359, 4294901760
  %1810 = vmatpush1.msra.mxu0 %v1809
  %1811 = vmatprep.subr.mxu0 0.0
  %v1812 = vand.u32 %v1358, 4294901760
  %1813 = vmatpush1.msra.mxu0 %v1812
  %1814 = vmatprep.subr.mxu0 0.0
  %v1815 = vand.u32 %v1357, 4294901760
  %1816 = vmatpush1.msra.mxu0 %v1815
  %1817 = vmatprep.subr.mxu0 0.0
  %v1818 = vand.u32 %v1356, 4294901760
  %1819 = vmatpush1.msra.mxu0 %v1818
  %1820 = vmatprep.subr.mxu0 0.0
  %1821 = vmatpush2.msra.mxu0 0.0
  %1822 = vmatprep.subr.mxu0 0.0
  %1823 = vmatpush2.msra.mxu0 0.0
  %1824 = vmatprep.subr.mxu0 0.0
  %1825 = vmatpush2.msra.mxu0 0.0
  %1826 = vmatprep.subr.mxu0 0.0
  %1827 = vmatpush2.msra.mxu0 0.0
  %1828 = vmatprep.subr.mxu0 0.0
  %1829 = vmatpush2.msra.mxu0 0.0
  %1830 = vmatprep.subr.mxu0 0.0
  %1831 = vmatpush2.msra.mxu0 0.0
  %1832 = vmatprep.subr.mxu0 0.0
  %1833 = vmatpush2.msra.mxu0 0.0
  %1834 = vmatprep.subr.mxu0 0.0
  %1835 = vmatpush2.msra.mxu0 0.0
  %1836 = vmatprep.subr.mxu0 0.0
  %1837 = vmatpush2.msra.mxu0 0.0
  %1838 = vmatprep.subr.mxu0 0.0
  %1839 = vmatpush2.msra.mxu0 0.0
  %1840 = vmatprep.subr.mxu0 0.0
  %1841 = vmatpush2.msra.mxu0 0.0
  %1842 = vmatprep.subr.mxu0 0.0
  %1843 = vmatpush2.msra.mxu0 0.0
  %1844 = vmatprep.subr.mxu0 0.0
  %1845 = vmatpush2.msra.mxu0 0.0
  %1846 = vmatprep.subr.mxu0 0.0
  %1847 = vmatpush2.msra.mxu0 0.0
  %1848 = vmatprep.subr.mxu0 0.0
  %1849 = vmatpush2.msra.mxu0 0.0
  %1850 = vmatprep.subr.mxu0 0.0
  %1851 = vmatpush2.msra.mxu0 0.0
  %1852 = vmatprep.mubr.f32.mxu0 0.0
  %v1853 = vand.u32 %v1372, 4294901760
  %1854 = vmatmul.mubr.f32.gmra.mxu0 %v1853
  %v1855 = vpop.f32.mrf.mxu0
  %v1856 = vadd.f32 %v1781, %v1855
  %v1857 = vpop.f32.mrf.mxu0
  %1858 = vdwg.mxu0
  %v1859 = vtanh.pop %v1856
  %v1860 = vmul.f32 %v1859, 2.0
  %1861 = vst [vmem:[%s7] sm:$0x1] %v1860
  // Predicated region
  $region30: #{actor_forward.1} parent=0 // pred_check
    _
  $region31: #{actor_forward.1} parent=0 // pred_check_branch
    %1863 = sbr.rel (0) target = $region33
  $region32: #{actor_forward.1} parent=0 // pred_region
    _
  $region33: #{actor_forward.1} parent=0 // pred_fallthru
    _
  // Predicated region
  $region34: #{actor_forward.1} parent=0 // pred_check
    _
  $region35: #{actor_forward.1} parent=0 // pred_check_branch
    %1865 = sbr.rel (0) target = $region37
  $region36: #{actor_forward.1} parent=0 // pred_region
    _
  $region37: #{actor_forward.1} parent=0 // pred_fallthru
    _

</llo_original>
